<compile_context>
chip_gen: v6e
topology: v6e:2x2x1
jax: 0.10.0
libtpu: 0.0.40
codegen_flags: <defaults>
</compile_context>

<pallas_src>
import functools

import jax
import jax.numpy as jnp
from jax.experimental import pallas as pl
from jax.experimental.pallas import tpu as pltpu


def _round_up(a, b):
    return -(-a // b) * b


@functools.lru_cache(maxsize=None)
def _vmem_budget_bytes():
    """Per-generation VMEM budget with headroom for compiler-internal scratch."""
    cap = 64 * 1024 * 1024
    try:
        cap = int(pltpu.get_tpu_info().vmem_capacity_bytes)
    except Exception:
        pass
    return max((cap * 3) // 4, 16 * 1024 * 1024)


# ----------------------------- Pallas kernel --------------------------------
def _gate_conv_kernel(x_ref, w_ref, b_ref, o_ref, *, kh, kw, stride, th, wo, c_in,
                      c_half):
    # x_ref: (1, Hp, Wp, C_in)       padded NHWC image of this batch element
    # w_ref: (kh*kw*C_in, cop)       flattened weights, columns [x-half | y-half | pad]
    # b_ref: (1, cop)                bias (f32), same column layout
    # o_ref: (1, 1, th*wo, c_half)   gated output tile (flattened spatial)
    i = pl.program_id(1)
    tm = th * wo
    row0 = i * (th * stride)

    # Build the im2col patch once per tile from the resident image (no big intermediate
    # value is re-sliced per tap; taps are direct ref loads).
    cols = []
    for di in range(kh):                                  # unrolled at trace time
        for dj in range(kw):
            if stride == 1:
                win = x_ref[0, pl.ds(row0 + di, th), dj:dj + wo, :]
            else:
                win = x_ref[0, pl.ds(row0 + di, th, stride),
                            pl.ds(dj, wo, stride), :]
            cols.append(win)                              # (th, wo, c_in)
    patch = jnp.concatenate(cols, axis=-1).reshape(tm, kh * kw * c_in)

    # Single fused MXU contraction, f32 accumulation.
    acc = jnp.dot(patch, w_ref[...], preferred_element_type=jnp.float32)
    acc = acc + b_ref[...]

    xh = acc[:, :c_half]                                  # torch.chunk(.., 2, dim=1)[0]
    yh = acc[:, c_half:2 * c_half]                        # torch.chunk(.., 2, dim=1)[1]
    xh = jnp.where(xh >= 0, xh, 0.2 * xh)                 # LeakyReLU(0.2)
    yh = 1.0 / (1.0 + jnp.exp(-yh))                       # exact sigmoid
    o_ref[0, 0] = (xh * yh).astype(o_ref.dtype)


# ------------------------------ Forward (JAX glue + pallas_call) -------------
@functools.partial(jax.jit, static_argnames=("kh", "kw", "stride", "padding", "c_half",
                                              "vmem_budget"))
def _gate_conv_forward(x, w_all, b_all, *, kh, kw, stride, padding, c_half, vmem_budget):
    N, C, H, W = x.shape
    cop = w_all.shape[-1]
    in_dtype = w_all.dtype
    in_bytes = w_all.dtype.itemsize
    out_dtype = x.dtype
    out_bytes = x.dtype.itemsize
    sub_in = 32 // in_bytes                               # sublane packing: 16 bf16, 8 f32

    Ho = (H + 2 * padding - kh) // stride + 1
    Wo = (W + 2 * padding - kw) // stride + 1
    assert Ho > 0 and Wo > 0
    K = kh * kw * C

    # Pad the input width to the sublane packing (avoids masked partial-sublane loads).
    Wp = _round_up((Wo - 1) * stride + kw, sub_in)

    # Row-tile selection: target ~256 output positions per step (512 on big-VMEM chips),
    # then shrink while the *padded* VMEM footprint exceeds the budget.
    tm_target = 512 if vmem_budget >= 72 * 1024 * 1024 else 256
    th = max(1, min(Ho, -(-tm_target // Wo)))
    lane_c = _round_up(C, 128)
    lane_out = _round_up(c_half, 128)
    lane_k = _round_up(K, 128)

    def footprint(th_):
        nh = -(-Ho // th_)
        hp = (nh * th_ - 1) * stride + kh
        tm_ = th_ * Wo
        x_b = 2 * hp * Wp * lane_c * in_bytes                       # resident image x2
        o_b = 2 * _round_up(tm_, 8) * lane_out * out_bytes
        w_b = 2 * (_round_up(K, sub_in) * cop * in_bytes + 8 * cop * 4)
        live = _round_up(tm_, 8) * (lane_k * in_bytes + 3 * cop * 4)
        return x_b + o_b + w_b + live + (2 << 20)

    while th > 1 and footprint(th) > vmem_budget:
        th = max(1, th // 2)
    # TODO(synk): if footprint(1) still exceeds the budget (huge spatial x tiny C_in),
    # switch to a halo-window manual-DMA / lane-dense channel-packing variant.

    nH = -(-Ho // th)
    Ho_pad = nH * th
    Hp = (Ho_pad - 1) * stride + kh
    tm = th * Wo

    # NCHW -> NHWC once; conv padding + tile/sublane alignment padding; cast for DMA.
    x_nhwc = jnp.transpose(x, (0, 2, 3, 1))
    pb_h = max(Hp - (H + padding), 0)
    pb_w = max(Wp - (W + padding), 0)
    x_nhwc = jnp.pad(x_nhwc, ((0, 0), (padding, pb_h), (padding, pb_w), (0, 0)))
    x_nhwc = x_nhwc[:, :Hp, :Wp, :].astype(in_dtype)

    kernel = functools.partial(_gate_conv_kernel, kh=kh, kw=kw, stride=stride,
                               th=th, wo=Wo, c_in=C, c_half=c_half)

    # Shard the batch axis across megacore TCs when possible so the resident image is
    # not replicated on both cores; only the single-image case shards the H-tile axis.
    dim_sem = ("parallel", "arbitrary") if N > 1 else ("arbitrary", "parallel")

    out = pl.pallas_call(
        kernel,
        out_shape=jax.ShapeDtypeStruct((N, nH, tm, c_half), out_dtype),
        grid_spec=pltpu.PrefetchScalarGridSpec(
            num_scalar_prefetch=0,
            grid=(N, nH),
            in_specs=[
                # Whole padded image of batch n: block index is constant across the
                # H-tile axis, so it is fetched from HBM exactly once per image.
                pl.BlockSpec((1, Hp, Wp, C), lambda n, i: (n, 0, 0, 0)),
                pl.BlockSpec((K, cop), lambda n, i: (0, 0)),
                pl.BlockSpec((1, cop), lambda n, i: (0, 0)),
            ],
            out_specs=pl.BlockSpec((1, 1, tm, c_half), lambda n, i: (n, i, 0, 0)),
        ),
        compiler_params=pltpu.CompilerParams(
            dimension_semantics=dim_sem,
            vmem_limit_bytes=int(vmem_budget),
        ),
    )(x_nhwc, w_all, b_all)

    out = out.reshape(N, Ho_pad, Wo, c_half)[:, :Ho]      # drop row padding
    return jnp.transpose(out, (0, 3, 1, 2))               # back to NCHW


# ------------------------------ Module ---------------------------------------
class GateConv:
    """Gate Convolution: Conv2d -> chunk(2, dim=1) -> LeakyReLU(0.2)(x) * sigmoid(y).
    NCHW in / NCHW out, matching the PyTorch reference (deterministic kaiming init).

    Note: activations/weights are fed to the MXU in `compute_dtype` (bf16 by default,
    f32 accumulation); expect ~1e-2 absolute deviation from a float32 PyTorch Conv2d.
    Pass compute_dtype=jnp.float32 for tighter parity."""

    def __init__(self, in_channels, out_channels, kernel_size, stride=1, padding=0,
                 dilation=1, groups=1, bias=True, key=None,
                 compute_dtype=jnp.bfloat16):
        assert out_channels % 2 == 0, "out_channels must be even for the gate chunk"
        # TODO(synk): dilation > 1 and groups > 1 are not implemented in the Pallas path.
        assert dilation == 1 and groups == 1
        self.in_channels = in_channels
        self.out_channels = out_channels
        self.kh = self.kw = int(kernel_size)
        self.stride = stride
        self.padding = padding
        self.c_half = out_channels // 2
        self.compute_dtype = compute_dtype

        key = jax.random.PRNGKey(42) if key is None else key
        kw_key, kb_key = jax.random.split(key)
        fan_in = in_channels * self.kh * self.kw
        std = (2.0 / fan_in) ** 0.5          # kaiming_normal_(mode='fan_in', a=0)
        self.weight = std * jax.random.normal(
            kw_key, (out_channels, in_channels, self.kh, self.kw), jnp.float32)
        if bias:
            bound = 1.0 / (fan_in ** 0.5)
            self.bias = jax.random.uniform(
                kb_key, (out_channels,), jnp.float32, minval=-bound, maxval=bound)
        else:
            self.bias = jnp.zeros((out_channels,), jnp.float32)

        # Pre-pack weights for the kernel:
        #   (C_out, C_in, kh, kw) -> (kh, kw, C_in, C_out) -> (kh*kw*C_in, C_out)
        # Both gate halves share one slab padded to a multiple of 128 output columns
        # (no per-half 128 padding).
        K = fan_in
        cop = _round_up(2 * self.c_half, 128)
        self.cop = cop
        w = jnp.transpose(self.weight, (2, 3, 1, 0)).reshape(K, out_channels)
        self.w_all = jnp.pad(w, ((0, 0), (0, cop - out_channels))).astype(compute_dtype)
        self.b_all = jnp.pad(self.bias, (0, cop - out_channels)).reshape(1, cop) \
                        .astype(jnp.float32)
        self.vmem_budget = _vmem_budget_bytes()

    def __call__(self, x):
        return _gate_conv_forward(x, self.w_all, self.b_all,
                                  kh=self.kh, kw=self.kw, stride=self.stride,
                                  padding=self.padding, c_half=self.c_half,
                                  vmem_budget=self.vmem_budget)


# ------------------------------ Self-test -------------------------------------
def _reference(x, weight, bias, stride, padding, c_half):
    out = jax.lax.conv_general_dilated(
        x, weight, window_strides=(stride, stride),
        padding=[(padding, padding), (padding, padding)],
        dimension_numbers=("NCHW", "OIHW", "NCHW"))
    out = out + bias[None, :, None, None]
    xh, yh = out[:, :c_half], out[:, c_half:]
    return jnp.where(xh >= 0, xh, 0.2 * xh) * (1.0 / (1.0 + jnp.exp(-yh)))


if __name__ == "__main__":
    # Primary config: batch=2, in_channels=4, out_channels=8, 16x16, k=3, s=1, p=1.
    x = jax.random.normal(jax.random.PRNGKey(0), (2, 4, 16, 16), jnp.float32)
    mod = GateConv(in_channels=4, out_channels=8, kernel_size=3,
                   stride=1, padding=1, key=jax.random.PRNGKey(1))
    y = mod(x)
    jax.block_until_ready(y)
    assert y.shape == (2, 4, 16, 16), y.shape
    assert bool(jnp.all(jnp.isfinite(y)))
    ref = _reference(x, mod.weight, mod.bias, 1, 1, mod.c_half)
    assert bool(jnp.allclose(y, ref, atol=1e-1, rtol=1e-1)), \
        float(jnp.max(jnp.abs(y - ref)))

    # Non-multiple-of-8 output width / no-padding path (masked stores, odd Wo).
    x2 = jax.random.normal(jax.random.PRNGKey(2), (1, 4, 13, 13), jnp.float32)
    mod2 = GateConv(in_channels=4, out_channels=8, kernel_size=3,
                    stride=1, padding=0, key=jax.random.PRNGKey(3))
    y2 = mod2(x2)
    jax.block_until_ready(y2)
    assert y2.shape == (1, 4, 11, 11), y2.shape
    ref2 = _reference(x2, mod2.weight, mod2.bias, 1, 0, mod2.c_half)
    assert bool(jnp.allclose(y2, ref2, atol=1e-1, rtol=1e-1)), \
        float(jnp.max(jnp.abs(y2 - ref2)))

    # TODO(synk): stride > 1 path (strided pl.ds loads) is implemented but not exercised
    # here; validate against the PyTorch reference before relying on it.
    print("KERNEL_OK")
</pallas_src>

<mosaic_0001>
module attributes {stable_mosaic.version = 11 : i64} {
  func.func @_gate_conv_kernel(%arg0: i32, %arg1: i32, %arg2: memref<1x18x32x4xbf16, #tpu.memory_space<vmem>>, %arg3: memref<36x128xbf16, #tpu.memory_space<vmem>>, %arg4: memref<1x128xf32, #tpu.memory_space<vmem>>, %arg5: memref<1x1x256x4xf32, #tpu.memory_space<vmem>>) attributes {dimension_semantics = [#tpu.dimension_semantics<parallel>, #tpu.dimension_semantics<arbitrary>], iteration_bounds = array<i64: 2, 1>, scalar_prefetch = 0 : i64, scratch_operands = 0 : i64, tpu.core_type = #tpu.core_type<tc>, window_params = [{transform_indices = @transform_0, window_bounds = array<i64: 1, 18, 32, 4>}, {pipeline_mode = #tpu.pipeline_mode<synchronous>, transform_indices = @transform_1, window_bounds = array<i64: 36, 128>}, {pipeline_mode = #tpu.pipeline_mode<synchronous>, transform_indices = @transform_2, window_bounds = array<i64: 1, 128>}, {transform_indices = @transform_3, window_bounds = array<i64: 1, 1, 256, 4>}]} {
    %c16_i32 = arith.constant 16 : i32
    %0 = arith.muli %arg1, %c16_i32 : i32
    %c0_i32 = arith.constant 0 : i32
    %1 = arith.addi %0, %c0_i32 : i32
    %c0 = arith.constant 0 : index
    %2 = arith.index_cast %1 : i32 to index
    %c0_0 = arith.constant 0 : index
    %c0_1 = arith.constant 0 : index
    %3 = vector.load %arg2[%c0, %2, %c0_0, %c0_1] : memref<1x18x32x4xbf16, #tpu.memory_space<vmem>>, vector<1x16x16x4xbf16>
    %4 = vector.shape_cast %3 : vector<1x16x16x4xbf16> to vector<16x16x4xbf16>
    %c0_i32_2 = arith.constant 0 : i32
    %5 = arith.addi %0, %c0_i32_2 : i32
    %c0_3 = arith.constant 0 : index
    %6 = arith.index_cast %5 : i32 to index
    %c1 = arith.constant 1 : index
    %c0_4 = arith.constant 0 : index
    %7 = vector.load %arg2[%c0_3, %6, %c1, %c0_4] : memref<1x18x32x4xbf16, #tpu.memory_space<vmem>>, vector<1x16x16x4xbf16>
    %8 = vector.shape_cast %7 : vector<1x16x16x4xbf16> to vector<16x16x4xbf16>
    %c0_i32_5 = arith.constant 0 : i32
    %9 = arith.addi %0, %c0_i32_5 : i32
    %c0_6 = arith.constant 0 : index
    %10 = arith.index_cast %9 : i32 to index
    %c2 = arith.constant 2 : index
    %c0_7 = arith.constant 0 : index
    %11 = vector.load %arg2[%c0_6, %10, %c2, %c0_7] : memref<1x18x32x4xbf16, #tpu.memory_space<vmem>>, vector<1x16x16x4xbf16>
    %12 = vector.shape_cast %11 : vector<1x16x16x4xbf16> to vector<16x16x4xbf16>
    %c1_i32 = arith.constant 1 : i32
    %13 = arith.addi %0, %c1_i32 : i32
    %c0_8 = arith.constant 0 : index
    %14 = arith.index_cast %13 : i32 to index
    %c0_9 = arith.constant 0 : index
    %c0_10 = arith.constant 0 : index
    %15 = vector.load %arg2[%c0_8, %14, %c0_9, %c0_10] : memref<1x18x32x4xbf16, #tpu.memory_space<vmem>>, vector<1x16x16x4xbf16>
    %16 = vector.shape_cast %15 : vector<1x16x16x4xbf16> to vector<16x16x4xbf16>
    %c1_i32_11 = arith.constant 1 : i32
    %17 = arith.addi %0, %c1_i32_11 : i32
    %c0_12 = arith.constant 0 : index
    %18 = arith.index_cast %17 : i32 to index
    %c1_13 = arith.constant 1 : index
    %c0_14 = arith.constant 0 : index
    %19 = vector.load %arg2[%c0_12, %18, %c1_13, %c0_14] : memref<1x18x32x4xbf16, #tpu.memory_space<vmem>>, vector<1x16x16x4xbf16>
    %20 = vector.shape_cast %19 : vector<1x16x16x4xbf16> to vector<16x16x4xbf16>
    %c1_i32_15 = arith.constant 1 : i32
    %21 = arith.addi %0, %c1_i32_15 : i32
    %c0_16 = arith.constant 0 : index
    %22 = arith.index_cast %21 : i32 to index
    %c2_17 = arith.constant 2 : index
    %c0_18 = arith.constant 0 : index
    %23 = vector.load %arg2[%c0_16, %22, %c2_17, %c0_18] : memref<1x18x32x4xbf16, #tpu.memory_space<vmem>>, vector<1x16x16x4xbf16>
    %24 = vector.shape_cast %23 : vector<1x16x16x4xbf16> to vector<16x16x4xbf16>
    %c2_i32 = arith.constant 2 : i32
    %25 = arith.addi %0, %c2_i32 : i32
    %c0_19 = arith.constant 0 : index
    %26 = arith.index_cast %25 : i32 to index
    %c0_20 = arith.constant 0 : index
    %c0_21 = arith.constant 0 : index
    %27 = vector.load %arg2[%c0_19, %26, %c0_20, %c0_21] : memref<1x18x32x4xbf16, #tpu.memory_space<vmem>>, vector<1x16x16x4xbf16>
    %28 = vector.shape_cast %27 : vector<1x16x16x4xbf16> to vector<16x16x4xbf16>
    %c2_i32_22 = arith.constant 2 : i32
    %29 = arith.addi %0, %c2_i32_22 : i32
    %c0_23 = arith.constant 0 : index
    %30 = arith.index_cast %29 : i32 to index
    %c1_24 = arith.constant 1 : index
    %c0_25 = arith.constant 0 : index
    %31 = vector.load %arg2[%c0_23, %30, %c1_24, %c0_25] : memref<1x18x32x4xbf16, #tpu.memory_space<vmem>>, vector<1x16x16x4xbf16>
    %32 = vector.shape_cast %31 : vector<1x16x16x4xbf16> to vector<16x16x4xbf16>
    %c2_i32_26 = arith.constant 2 : i32
    %33 = arith.addi %0, %c2_i32_26 : i32
    %c0_27 = arith.constant 0 : index
    %34 = arith.index_cast %33 : i32 to index
    %c2_28 = arith.constant 2 : index
    %c0_29 = arith.constant 0 : index
    %35 = vector.load %arg2[%c0_27, %34, %c2_28, %c0_29] : memref<1x18x32x4xbf16, #tpu.memory_space<vmem>>, vector<1x16x16x4xbf16>
    %36 = vector.shape_cast %35 : vector<1x16x16x4xbf16> to vector<16x16x4xbf16>
    %37 = tpu.concatenate %4, %8, %12, %16, %20, %24, %28, %32, %36 in 2 : vector<16x16x4xbf16>, vector<16x16x4xbf16>, vector<16x16x4xbf16>, vector<16x16x4xbf16>, vector<16x16x4xbf16>, vector<16x16x4xbf16>, vector<16x16x4xbf16>, vector<16x16x4xbf16>, vector<16x16x4xbf16> -> vector<16x16x36xbf16>
    %38 = vector.shape_cast %37 : vector<16x16x36xbf16> to vector<256x36xbf16>
    %c0_30 = arith.constant 0 : index
    %c0_31 = arith.constant 0 : index
    %39 = vector.load %arg3[%c0_30, %c0_31] : memref<36x128xbf16, #tpu.memory_space<vmem>>, vector<36x128xbf16>
    %cst = arith.constant dense<0.000000e+00> : vector<256x128xf32>
    %40 = tpu.matmul %38, %39, %cst {dimension_numbers = #tpu.dot_dimension_numbers<[1], [0], [0], [1], [0, 0, 1, 1], [], []>} : vector<256x36xbf16>, vector<36x128xbf16>, vector<256x128xf32> -> vector<256x128xf32>
    %c0_32 = arith.constant 0 : index
    %c0_33 = arith.constant 0 : index
    %41 = vector.load %arg4[%c0_32, %c0_33] : memref<1x128xf32, #tpu.memory_space<vmem>>, vector<1x128xf32>
    %42 = vector.broadcast %41 : vector<1x128xf32> to vector<256x128xf32>
    %43 = arith.addf %40, %42 : vector<256x128xf32>
    %44 = vector.extract_strided_slice %43 {offsets = [0, 0], sizes = [256, 4], strides = [1, 1]} : vector<256x128xf32> to vector<256x4xf32>
    %45 = vector.extract_strided_slice %43 {offsets = [0, 4], sizes = [256, 4], strides = [1, 1]} : vector<256x128xf32> to vector<256x4xf32>
    %cst_34 = arith.constant 0.000000e+00 : f32
    %46 = vector.broadcast %cst_34 : f32 to vector<256x4xf32>
    %47 = arith.cmpf oge, %44, %46 : vector<256x4xf32>
    %cst_35 = arith.constant 2.000000e-01 : f32
    %48 = vector.broadcast %cst_35 : f32 to vector<256x4xf32>
    %49 = arith.mulf %48, %44 : vector<256x4xf32>
    %50 = arith.select %47, %44, %49 : vector<256x4xi1>, vector<256x4xf32>
    %cst_36 = arith.constant 0.000000e+00 : f32
    %51 = vector.broadcast %cst_36 : f32 to vector<256x4xf32>
    %52 = arith.subf %51, %45 : vector<256x4xf32>
    %53 = math.exp %52 : vector<256x4xf32>
    %cst_37 = arith.constant 1.000000e+00 : f32
    %54 = vector.broadcast %cst_37 : f32 to vector<256x4xf32>
    %55 = arith.addf %54, %53 : vector<256x4xf32>
    %cst_38 = arith.constant 1.000000e+00 : f32
    %56 = vector.broadcast %cst_38 : f32 to vector<256x4xf32>
    %57 = arith.divf %56, %55 : vector<256x4xf32>
    %58 = arith.mulf %50, %57 : vector<256x4xf32>
    %c0_39 = arith.constant 0 : index
    %c0_40 = arith.constant 0 : index
    %c0_41 = arith.constant 0 : index
    %c0_42 = arith.constant 0 : index
    %59 = vector.load %arg5[%c0_39, %c0_40, %c0_41, %c0_42] : memref<1x1x256x4xf32, #tpu.memory_space<vmem>>, vector<1x1x256x4xf32>
    %60 = vector.shape_cast %59 : vector<1x1x256x4xf32> to vector<256x4xf32>
    %61 = vector.shape_cast %58 : vector<256x4xf32> to vector<1x1x256x4xf32>
    tpu.vector_store %arg5[%c0_39, %c0_40, %c0_41, %c0_42], %61 {strides = array<i32>} : memref<1x1x256x4xf32, #tpu.memory_space<vmem>>, vector<1x1x256x4xf32>,
    return
  }
  func.func @transform_0(%arg0: i32, %arg1: i32) -> (i32, i32, i32, i32) {
    %c0_i32 = arith.constant 0 : i32
    %c0_i32_0 = arith.constant 0 : i32
    %c0_i32_1 = arith.constant 0 : i32
    %c0_i32_2 = arith.constant 0 : i32
    return %arg0, %c0_i32, %c0_i32_0, %c0_i32_1 : i32, i32, i32, i32
  }
  func.func @transform_1(%arg0: i32, %arg1: i32) -> (i32, i32) {
    %c0_i32 = arith.constant 0 : i32
    %c0_i32_0 = arith.constant 0 : i32
    %c0_i32_1 = arith.constant 0 : i32
    return %c0_i32, %c0_i32_0 : i32, i32
  }
  func.func @transform_2(%arg0: i32, %arg1: i32) -> (i32, i32) {
    %c0_i32 = arith.constant 0 : i32
    %c0_i32_0 = arith.constant 0 : i32
    %c0_i32_1 = arith.constant 0 : i32
    return %c0_i32, %c0_i32_0 : i32, i32
  }
  func.func @transform_3(%arg0: i32, %arg1: i32) -> (i32, i32, i32, i32) {
    %c0_i32 = arith.constant 0 : i32
    %c0_i32_0 = arith.constant 0 : i32
    %c0_i32_1 = arith.constant 0 : i32
    return %arg0, %arg1, %c0_i32, %c0_i32_0 : i32, i32, i32, i32
  }
}

</mosaic_0001>

<llo_original>
// kernel: _gate_conv_forward.1
$region0: #{_gate_conv_forward.1}
  #allocation0 [shape = 'u32[]', space=smem, size = 0x4, offset = 0x4, fixed_abs, tag = 'smem constant byte address 0x4 - core index']
  #allocation1 [shape = 'u32[144,128]{1,0:T(1,128)}', space=vmem, size = 0x12000, scoped, tag = 'internal scratch']
  %s0 = inlined_call_operand.vmem [shape: bf16[2,18,32,4], index: 0, kind: input, shape index: {}]
  %s1 = inlined_call_operand.vmem [shape: bf16[36,128], index: 1, kind: input, shape index: {}]
  %s2 = inlined_call_operand.vmem [shape: f32[1,128], index: 2, kind: input, shape index: {}]
  %s3 = inlined_call_operand.vmem [shape: f32[2,1,256,4], index: 3, kind: output, shape index: {}]
  %s4 = sld [smem:[#allocation0]]
  $region45: #{_gate_conv_forward.1} parent=0
    _
  %s6 = ssub.s32 1, %s4
  %s7 = scalar_select 0, %s6, %s4
  loop: start=0, step=1, limit=4
  $region2: #{_gate_conv_forward.1} parent=0 // loop_pre_header
    _
  $region3: #{_gate_conv_forward.1} parent=0 // loop_header
    %s9 = sphi 0, %s13
    %p10 = scmp.ge.s32.totalorder %s9, 4
    %s16 = sphi 0, %s28
    %s17 = sphi 0, %s24
    %s18 = sphi 0, %s16
    %s19 = sphi 0, %s17
    %s20 = sphi 0, %s18
    %s21 = sphi 0, %s19
    %s31 = sphi 0, %s33
    %s34 = sphi 0, %s31
    %s35 = sphi 0, %s34
    %s51 = sphi 0, %s35
    %s55 = sphi 0, %s55
    %s57 = sphi 0, %s55
    %s58 = sphi 0, %s57
    %s72 = sphi 0, %s58
    %s76 = sphi 0, %s76
    %s78 = sphi 0, %s76
    %s79 = sphi 0, %s78
    %s93 = sphi 0, %s79
    %s101 = sphi 0, %s103
    %s104 = sphi 0, %s101
    %s105 = sphi 0, %s104
    %s121 = sphi 0, %s105
  $region4: #{_gate_conv_forward.1} parent=0 // loop_header_branch
    %12 = sbr.rel (%p10) target = $region8
  $region5: #{_gate_conv_forward.1} parent=0 // loop_body
    %s14 = ssub.s32 %s9, 1
    %s15 = ssub.s32 %s9, 2
    %s22 = sadd.s32 1, %s17
    %p23 = scmp.ge.s32.totalorder %s22, 1
    %s24 = scalar_select %p23, 0, %s22
    %s25 = sadd.s32 1, %s16
    %s26 = scalar_select %p23, %s25, %s16
    %p27 = scmp.ge.s32.totalorder %s26, 2
    %s28 = scalar_select %p27, 0, %s26
    %s29 = ssub.s32 %s16, %s28
    %p30 = scmp.eq.s32.totalorder %s29, 0
    %s32 = sadd.s32 %s31, 1
    %s33 = scalar_select %p30, %s31, %s32
    %p36 = pneg %p30
    %p37 = scmp.eq.s32.totalorder %s9, 1
    %p38 = por %p36, %p37
    %p39 = scmp.ne.s32.totalorder %s31, %s34
    %p40 = scmp.eq.s32.totalorder %s9, 0
    %p41 = por %p39, %p40
    %p42 = scmp.ne.s32.totalorder %s31, %s34
    %p43 = scmp.eq.s32.totalorder %s14, 1
    %p44 = por %p42, %p43
    %p45 = scmp.ne.s32.totalorder %s34, %s35
    %p46 = scmp.eq.s32.totalorder %s14, 0
    %p47 = por %p45, %p46
    %p48 = scmp.ne.s32.totalorder %s34, %s35
    %p49 = scmp.eq.s32.totalorder %s15, 1
    %p50 = por %p48, %p49
    %p52 = scmp.ne.s32.totalorder %s35, %s51
    %p53 = scmp.eq.s32.totalorder %s15, 0
    %p54 = por %p52, %p53
    %s56 = sadd.s32 %s55, 1
    %p59 = scmp.eq.s32.totalorder %s9, 1
    %p60 = scmp.ne.s32.totalorder %s55, %s57
    %p61 = scmp.eq.s32.totalorder %s9, 0
    %p62 = por %p60, %p61
    %p63 = scmp.ne.s32.totalorder %s55, %s57
    %p64 = scmp.eq.s32.totalorder %s14, 1
    %p65 = por %p63, %p64
    %p66 = scmp.ne.s32.totalorder %s57, %s58
    %p67 = scmp.eq.s32.totalorder %s14, 0
    %p68 = por %p66, %p67
    %p69 = scmp.ne.s32.totalorder %s57, %s58
    %p70 = scmp.eq.s32.totalorder %s15, 1
    %p71 = por %p69, %p70
    %p73 = scmp.ne.s32.totalorder %s58, %s72
    %p74 = scmp.eq.s32.totalorder %s15, 0
    %p75 = por %p73, %p74
    %s77 = sadd.s32 %s76, 1
    %p80 = scmp.eq.s32.totalorder %s9, 1
    %p81 = scmp.ne.s32.totalorder %s76, %s78
    %p82 = scmp.eq.s32.totalorder %s9, 0
    %p83 = por %p81, %p82
    %p84 = scmp.ne.s32.totalorder %s76, %s78
    %p85 = scmp.eq.s32.totalorder %s14, 1
    %p86 = por %p84, %p85
    %p87 = scmp.ne.s32.totalorder %s78, %s79
    %p88 = scmp.eq.s32.totalorder %s14, 0
    %p89 = por %p87, %p88
    %p90 = scmp.ne.s32.totalorder %s78, %s79
    %p91 = scmp.eq.s32.totalorder %s15, 1
    %p92 = por %p90, %p91
    %p94 = scmp.ne.s32.totalorder %s79, %s93
    %p95 = scmp.eq.s32.totalorder %s15, 0
    %p96 = por %p94, %p95
    %s97 = ssub.s32 %s16, %s28
    %s98 = ssub.s32 %s17, %s24
    %s99 = sor.u32 %s97, %s98
    %p100 = scmp.eq.s32.totalorder %s99, 0
    %s102 = sadd.s32 %s101, 1
    %s103 = scalar_select %p100, %s101, %s102
    %p106 = pneg %p100
    %p107 = scmp.eq.s32.totalorder %s9, 1
    %p108 = por %p106, %p107
    %p109 = scmp.ne.s32.totalorder %s101, %s104
    %p110 = scmp.eq.s32.totalorder %s9, 0
    %p111 = por %p109, %p110
    %p112 = scmp.ne.s32.totalorder %s101, %s104
    %p113 = scmp.eq.s32.totalorder %s14, 1
    %p114 = por %p112, %p113
    %p115 = scmp.ne.s32.totalorder %s104, %s105
    %p116 = scmp.eq.s32.totalorder %s14, 0
    %p117 = por %p115, %p116
    %p118 = scmp.ne.s32.totalorder %s104, %s105
    %p119 = scmp.eq.s32.totalorder %s15, 1
    %p120 = por %p118, %p119
    %p122 = scmp.ne.s32.totalorder %s105, %s121
    %p123 = scmp.eq.s32.totalorder %s15, 0
    %p124 = por %p122, %p123
    %p125 = scmp.le.s32.totalorder 1, %s9
    %p126 = scmp.lt.s32.totalorder %s9, 3
    %p127 = pnand %p125, %p126
    %p128 = pneg %p127
    // Predicated region
    $region9: #{_gate_conv_forward.1} parent=5 // pred_check
      _
    $region10: #{_gate_conv_forward.1} parent=5 // pred_check_branch
      %130 = sbr.rel (%p127) target = $region12
    $region11: #{_gate_conv_forward.1} parent=5 // pred_region
      %s131 = ssub.s32 %s9, 1
      // Predicated region
      $region13: #{_gate_conv_forward.1} parent=11 // pred_check
        %p132 = pneg %p68
      $region14: #{_gate_conv_forward.1} parent=11 // pred_check_branch
        %134 = sbr.rel (%p132) target = $region16
      $region15: #{_gate_conv_forward.1} parent=11 // pred_region
        _
      $region16: #{_gate_conv_forward.1} parent=11 // pred_fallthru
        _
      // Predicated region
      $region17: #{_gate_conv_forward.1} parent=11 // pred_check
        %p135 = pneg %p89
      $region18: #{_gate_conv_forward.1} parent=11 // pred_check_branch
        %137 = sbr.rel (%p135) target = $region20
      $region19: #{_gate_conv_forward.1} parent=11 // pred_region
        _
      $region20: #{_gate_conv_forward.1} parent=11 // pred_fallthru
        _
    $region12: #{_gate_conv_forward.1} parent=5 // pred_fallthru
      _
    %p138 = scmp.lt.s32.totalorder %s9, 2
    // Predicated region
    $region21: #{_gate_conv_forward.1} parent=5 // pred_check
      %p139 = pneg %p138
    $region22: #{_gate_conv_forward.1} parent=5 // pred_check_branch
      %141 = sbr.rel (%p139) target = $region24
    $region23: #{_gate_conv_forward.1} parent=5 // pred_region
      // Predicated region
      $region25: #{_gate_conv_forward.1} parent=23 // pred_check
        %p142 = pneg %p41
      $region26: #{_gate_conv_forward.1} parent=23 // pred_check_branch
        %144 = sbr.rel (%p142) target = $region28
      $region27: #{_gate_conv_forward.1} parent=23 // pred_region
        %p145 = scmp.lt.s32.totalorder %s16, 1
        %s146 = scalar_select %p145, %s16, 1
        %s147 = smul.addr %s146, 72
        %s148 = smul.addr %s147, 4
        %s149 = scalar_lea.vmem %s0, %s148
      $region28: #{_gate_conv_forward.1} parent=23 // pred_fallthru
        _
    $region24: #{_gate_conv_forward.1} parent=5 // pred_fallthru
      _
    %p150 = scmp.le.s32.totalorder 1, %s9
    %p151 = scmp.lt.s32.totalorder %s9, 3
    %p152 = pnand %p150, %p151
    %p153 = pneg %p152
    // Predicated region
    $region29: #{_gate_conv_forward.1} parent=5 // pred_check
      _
    $region30: #{_gate_conv_forward.1} parent=5 // pred_check_branch
      %155 = sbr.rel (%p152) target = $region32
    $region31: #{_gate_conv_forward.1} parent=5 // pred_region
      %s156 = ssub.s32 %s9, 1
      %p157 = scmp.lt.s32.totalorder %s18, 1
      %s158 = scalar_select %p157, %s18, 1
      %s159 = smul.addr %s158, 72
      %s160 = smul.addr %s159, 4
      %s161 = scalar_lea.vmem %s0, %s160
      %p162 = pneg %p47
      %p163 = pneg %p44
      %p164 = pneg %p68
      %p165 = pneg %p65
      %p166 = pneg %p89
      %p167 = pneg %p86
      %p168 = pneg %p117
      %p169 = pneg %p114
      %p170 = scmp.lt.s32.totalorder %s18, 1
      %s171 = scalar_select %p170, %s18, 1
      %p172 = scmp.lt.s32.totalorder %s19, 0
      %s173 = scalar_select %p172, %s19, 0
      %s174 = smul.addr %s173, 32
      %s175 = smul.addr %s171, 32
      %s176 = sadd.s32 %s174, %s175
      %s177 = smul.addr %s176, 8
      %s178 = scalar_lea.vmem %s3, %s177
      %p179 = scmp.lt.s32.totalorder %s18, 1
      %s180 = scalar_select %p179, %s18, 1
      %s181 = smul.addr %s180, 72
      %s182 = smul.addr %s181, 4
      %s183 = scalar_lea.vmem %s0, %s182
      %p184 = scmp.lt.s32.totalorder %s18, 1
      %s185 = scalar_select %p184, %s18, 1
      %p186 = scmp.lt.s32.totalorder %s19, 0
      %s187 = scalar_select %p186, %s19, 0
      %s188 = smul.addr %s187, 32
      %s189 = smul.addr %s185, 32
      %s190 = sadd.s32 %s188, %s189
      %s191 = smul.addr %s190, 8
      %s192 = scalar_lea.vmem %s3, %s191
      %s194 = smul.u32 %s19, 16
      %s195 = smul.u32 %s194, 4
      %s196 = smul.addr %s195, 4
      %s197 = scalar_lea.vmem %s183, %s196
      %v198 = vld [vmem:[%s197] sm:$0xf]
      %v199 = vld [vmem:[%s197 + $0x4] sm:$0xf]
      %v200 = vld [vmem:[%s197 + $0x10] sm:$0xf]
      %v201 = vld [vmem:[%s197 + $0x14] sm:$0xf]
      %v202 = vld [vmem:[%s197 + $0x20] sm:$0xf]
      %v203 = vld [vmem:[%s197 + $0x24] sm:$0xf]
      %v204 = vld [vmem:[%s197 + $0x30] sm:$0xf]
      %v205 = vld [vmem:[%s197 + $0x34] sm:$0xf]
      %v206 = vld [vmem:[%s197 + $0x40] sm:$0xf]
      %v207 = vld [vmem:[%s197 + $0x44] sm:$0xf]
      %v208 = vld [vmem:[%s197 + $0x50] sm:$0xf]
      %v209 = vld [vmem:[%s197 + $0x54] sm:$0xf]
      %v210 = vld [vmem:[%s197 + $0x60] sm:$0xf]
      %v211 = vld [vmem:[%s197 + $0x64] sm:$0xf]
      %v212 = vld [vmem:[%s197 + $0x70] sm:$0xf]
      %v213 = vld [vmem:[%s197 + $0x74] sm:$0xf]
      %v214 = vld [vmem:[%s197 + $0x80] sm:$0xf]
      %v215 = vld [vmem:[%s197 + $0x84] sm:$0xf]
      %v216 = vld [vmem:[%s197 + $0x90] sm:$0xf]
      %v217 = vld [vmem:[%s197 + $0x94] sm:$0xf]
      %v218 = vld [vmem:[%s197 + $0xa0] sm:$0xf]
      %v219 = vld [vmem:[%s197 + $0xa4] sm:$0xf]
      %v220 = vld [vmem:[%s197 + $0xb0] sm:$0xf]
      %v221 = vld [vmem:[%s197 + $0xb4] sm:$0xf]
      %v222 = vld [vmem:[%s197 + $0xc0] sm:$0xf]
      %v223 = vld [vmem:[%s197 + $0xc4] sm:$0xf]
      %v224 = vld [vmem:[%s197 + $0xd0] sm:$0xf]
      %v225 = vld [vmem:[%s197 + $0xd4] sm:$0xf]
      %v226 = vld [vmem:[%s197 + $0xe0] sm:$0xf]
      %v227 = vld [vmem:[%s197 + $0xe4] sm:$0xf]
      %v228 = vld [vmem:[%s197 + $0xf0] sm:$0xf]
      %v229 = vld [vmem:[%s197 + $0xf4] sm:$0xf]
      %v230 = vld [vmem:[%s197 + $0x8] sm:$0x1]
      %v231 = vld [vmem:[%s197 + $0x18] sm:$0x1]
      %v232 = vld [vmem:[%s197 + $0x28] sm:$0x1]
      %v233 = vld [vmem:[%s197 + $0x38] sm:$0x1]
      %v234 = vld [vmem:[%s197 + $0x48] sm:$0x1]
      %v235 = vld [vmem:[%s197 + $0x58] sm:$0x1]
      %v236 = vld [vmem:[%s197 + $0x68] sm:$0x1]
      %v237 = vld [vmem:[%s197 + $0x78] sm:$0x1]
      %v238 = vld [vmem:[%s197 + $0x88] sm:$0x1]
      %v239 = vld [vmem:[%s197 + $0x98] sm:$0x1]
      %v240 = vld [vmem:[%s197 + $0xa8] sm:$0x1]
      %v241 = vld [vmem:[%s197 + $0xb8] sm:$0x1]
      %v242 = vld [vmem:[%s197 + $0xc8] sm:$0x1]
      %v243 = vld [vmem:[%s197 + $0xd8] sm:$0x1]
      %v244 = vld [vmem:[%s197 + $0xe8] sm:$0x1]
      %v245 = vld [vmem:[%s197 + $0xf8] sm:$0x1]
      %v246 = vld [vmem:[%s197] sm:$0xe]
      %v247 = vld [vmem:[%s197 + $0x10] sm:$0xe]
      %v248 = vld [vmem:[%s197 + $0x20] sm:$0xe]
      %v249 = vld [vmem:[%s197 + $0x30] sm:$0xe]
      %v250 = vld [vmem:[%s197 + $0x40] sm:$0xe]
      %v251 = vld [vmem:[%s197 + $0x50] sm:$0xe]
      %v252 = vld [vmem:[%s197 + $0x60] sm:$0xe]
      %v253 = vld [vmem:[%s197 + $0x70] sm:$0xe]
      %v254 = vld [vmem:[%s197 + $0x80] sm:$0xe]
      %v255 = vld [vmem:[%s197 + $0x90] sm:$0xe]
      %v256 = vld [vmem:[%s197 + $0xa0] sm:$0xe]
      %v257 = vld [vmem:[%s197 + $0xb0] sm:$0xe]
      %v258 = vld [vmem:[%s197 + $0xc0] sm:$0xe]
      %v259 = vld [vmem:[%s197 + $0xd0] sm:$0xe]
      %v260 = vld [vmem:[%s197 + $0xe0] sm:$0xe]
      %v261 = vld [vmem:[%s197 + $0xf0] sm:$0xe]
      %s262 = sadd.s32 %s194, 1
      %s263 = smul.u32 %s262, 4
      %s264 = smul.addr %s263, 4
      %s265 = scalar_lea.vmem %s183, %s264
      %v266 = vld [vmem:[%s265] sm:$0xf]
      %v267 = vld [vmem:[%s265 + $0x4] sm:$0xf]
      %v268 = vld [vmem:[%s265 + $0x10] sm:$0xf]
      %v269 = vld [vmem:[%s265 + $0x14] sm:$0xf]
      %v270 = vld [vmem:[%s265 + $0x20] sm:$0xf]
      %v271 = vld [vmem:[%s265 + $0x24] sm:$0xf]
      %v272 = vld [vmem:[%s265 + $0x30] sm:$0xf]
      %v273 = vld [vmem:[%s265 + $0x34] sm:$0xf]
      %v274 = vld [vmem:[%s265 + $0x40] sm:$0xf]
      %v275 = vld [vmem:[%s265 + $0x44] sm:$0xf]
      %v276 = vld [vmem:[%s265 + $0x50] sm:$0xf]
      %v277 = vld [vmem:[%s265 + $0x54] sm:$0xf]
      %v278 = vld [vmem:[%s265 + $0x60] sm:$0xf]
      %v279 = vld [vmem:[%s265 + $0x64] sm:$0xf]
      %v280 = vld [vmem:[%s265 + $0x70] sm:$0xf]
      %v281 = vld [vmem:[%s265 + $0x74] sm:$0xf]
      %v282 = vld [vmem:[%s265 + $0x80] sm:$0xf]
      %v283 = vld [vmem:[%s265 + $0x84] sm:$0xf]
      %v284 = vld [vmem:[%s265 + $0x90] sm:$0xf]
      %v285 = vld [vmem:[%s265 + $0x94] sm:$0xf]
      %v286 = vld [vmem:[%s265 + $0xa0] sm:$0xf]
      %v287 = vld [vmem:[%s265 + $0xa4] sm:$0xf]
      %v288 = vld [vmem:[%s265 + $0xb0] sm:$0xf]
      %v289 = vld [vmem:[%s265 + $0xb4] sm:$0xf]
      %v290 = vld [vmem:[%s265 + $0xc0] sm:$0xf]
      %v291 = vld [vmem:[%s265 + $0xc4] sm:$0xf]
      %v292 = vld [vmem:[%s265 + $0xd0] sm:$0xf]
      %v293 = vld [vmem:[%s265 + $0xd4] sm:$0xf]
      %v294 = vld [vmem:[%s265 + $0xe0] sm:$0xf]
      %v295 = vld [vmem:[%s265 + $0xe4] sm:$0xf]
      %v296 = vld [vmem:[%s265 + $0xf0] sm:$0xf]
      %v297 = vld [vmem:[%s265 + $0xf4] sm:$0xf]
      %v298 = vld [vmem:[%s265 + $0x8] sm:$0x1]
      %v299 = vld [vmem:[%s265 + $0x18] sm:$0x1]
      %v300 = vld [vmem:[%s265 + $0x28] sm:$0x1]
      %v301 = vld [vmem:[%s265 + $0x38] sm:$0x1]
      %v302 = vld [vmem:[%s265 + $0x48] sm:$0x1]
      %v303 = vld [vmem:[%s265 + $0x58] sm:$0x1]
      %v304 = vld [vmem:[%s265 + $0x68] sm:$0x1]
      %v305 = vld [vmem:[%s265 + $0x78] sm:$0x1]
      %v306 = vld [vmem:[%s265 + $0x88] sm:$0x1]
      %v307 = vld [vmem:[%s265 + $0x98] sm:$0x1]
      %v308 = vld [vmem:[%s265 + $0xa8] sm:$0x1]
      %v309 = vld [vmem:[%s265 + $0xb8] sm:$0x1]
      %v310 = vld [vmem:[%s265 + $0xc8] sm:$0x1]
      %v311 = vld [vmem:[%s265 + $0xd8] sm:$0x1]
      %v312 = vld [vmem:[%s265 + $0xe8] sm:$0x1]
      %v313 = vld [vmem:[%s265 + $0xf8] sm:$0x1]
      %v314 = vld [vmem:[%s265] sm:$0xe]
      %v315 = vld [vmem:[%s265 + $0x10] sm:$0xe]
      %v316 = vld [vmem:[%s265 + $0x20] sm:$0xe]
      %v317 = vld [vmem:[%s265 + $0x30] sm:$0xe]
      %v318 = vld [vmem:[%s265 + $0x40] sm:$0xe]
      %v319 = vld [vmem:[%s265 + $0x50] sm:$0xe]
      %v320 = vld [vmem:[%s265 + $0x60] sm:$0xe]
      %v321 = vld [vmem:[%s265 + $0x70] sm:$0xe]
      %v322 = vld [vmem:[%s265 + $0x80] sm:$0xe]
      %v323 = vld [vmem:[%s265 + $0x90] sm:$0xe]
      %v324 = vld [vmem:[%s265 + $0xa0] sm:$0xe]
      %v325 = vld [vmem:[%s265 + $0xb0] sm:$0xe]
      %v326 = vld [vmem:[%s265 + $0xc0] sm:$0xe]
      %v327 = vld [vmem:[%s265 + $0xd0] sm:$0xe]
      %v328 = vld [vmem:[%s265 + $0xe0] sm:$0xe]
      %v329 = vld [vmem:[%s265 + $0xf0] sm:$0xe]
      %s330 = sadd.s32 %s194, 2
      %s331 = smul.u32 %s330, 4
      %s332 = smul.addr %s331, 4
      %s333 = scalar_lea.vmem %s183, %s332
      %v334 = vld [vmem:[%s333] sm:$0xf]
      %v335 = vld [vmem:[%s333 + $0x4] sm:$0xf]
      %v336 = vld [vmem:[%s333 + $0x10] sm:$0xf]
      %v337 = vld [vmem:[%s333 + $0x14] sm:$0xf]
      %v338 = vld [vmem:[%s333 + $0x20] sm:$0xf]
      %v339 = vld [vmem:[%s333 + $0x24] sm:$0xf]
      %v340 = vld [vmem:[%s333 + $0x30] sm:$0xf]
      %v341 = vld [vmem:[%s333 + $0x34] sm:$0xf]
      %v342 = vld [vmem:[%s333 + $0x40] sm:$0xf]
      %v343 = vld [vmem:[%s333 + $0x44] sm:$0xf]
      %v344 = vld [vmem:[%s333 + $0x50] sm:$0xf]
      %v345 = vld [vmem:[%s333 + $0x54] sm:$0xf]
      %v346 = vld [vmem:[%s333 + $0x60] sm:$0xf]
      %v347 = vld [vmem:[%s333 + $0x64] sm:$0xf]
      %v348 = vld [vmem:[%s333 + $0x70] sm:$0xf]
      %v349 = vld [vmem:[%s333 + $0x74] sm:$0xf]
      %v350 = vld [vmem:[%s333 + $0x80] sm:$0xf]
      %v351 = vld [vmem:[%s333 + $0x84] sm:$0xf]
      %v352 = vld [vmem:[%s333 + $0x90] sm:$0xf]
      %v353 = vld [vmem:[%s333 + $0x94] sm:$0xf]
      %v354 = vld [vmem:[%s333 + $0xa0] sm:$0xf]
      %v355 = vld [vmem:[%s333 + $0xa4] sm:$0xf]
      %v356 = vld [vmem:[%s333 + $0xb0] sm:$0xf]
      %v357 = vld [vmem:[%s333 + $0xb4] sm:$0xf]
      %v358 = vld [vmem:[%s333 + $0xc0] sm:$0xf]
      %v359 = vld [vmem:[%s333 + $0xc4] sm:$0xf]
      %v360 = vld [vmem:[%s333 + $0xd0] sm:$0xf]
      %v361 = vld [vmem:[%s333 + $0xd4] sm:$0xf]
      %v362 = vld [vmem:[%s333 + $0xe0] sm:$0xf]
      %v363 = vld [vmem:[%s333 + $0xe4] sm:$0xf]
      %v364 = vld [vmem:[%s333 + $0xf0] sm:$0xf]
      %v365 = vld [vmem:[%s333 + $0xf4] sm:$0xf]
      %v366 = vld [vmem:[%s333 + $0x8] sm:$0x1]
      %v367 = vld [vmem:[%s333 + $0x18] sm:$0x1]
      %v368 = vld [vmem:[%s333 + $0x28] sm:$0x1]
      %v369 = vld [vmem:[%s333 + $0x38] sm:$0x1]
      %v370 = vld [vmem:[%s333 + $0x48] sm:$0x1]
      %v371 = vld [vmem:[%s333 + $0x58] sm:$0x1]
      %v372 = vld [vmem:[%s333 + $0x68] sm:$0x1]
      %v373 = vld [vmem:[%s333 + $0x78] sm:$0x1]
      %v374 = vld [vmem:[%s333 + $0x88] sm:$0x1]
      %v375 = vld [vmem:[%s333 + $0x98] sm:$0x1]
      %v376 = vld [vmem:[%s333 + $0xa8] sm:$0x1]
      %v377 = vld [vmem:[%s333 + $0xb8] sm:$0x1]
      %v378 = vld [vmem:[%s333 + $0xc8] sm:$0x1]
      %v379 = vld [vmem:[%s333 + $0xd8] sm:$0x1]
      %v380 = vld [vmem:[%s333 + $0xe8] sm:$0x1]
      %v381 = vld [vmem:[%s333 + $0xf8] sm:$0x1]
      %v382 = vld [vmem:[%s333] sm:$0xe]
      %v383 = vld [vmem:[%s333 + $0x10] sm:$0xe]
      %v384 = vld [vmem:[%s333 + $0x20] sm:$0xe]
      %v385 = vld [vmem:[%s333 + $0x30] sm:$0xe]
      %v386 = vld [vmem:[%s333 + $0x40] sm:$0xe]
      %v387 = vld [vmem:[%s333 + $0x50] sm:$0xe]
      %v388 = vld [vmem:[%s333 + $0x60] sm:$0xe]
      %v389 = vld [vmem:[%s333 + $0x70] sm:$0xe]
      %v390 = vld [vmem:[%s333 + $0x80] sm:$0xe]
      %v391 = vld [vmem:[%s333 + $0x90] sm:$0xe]
      %v392 = vld [vmem:[%s333 + $0xa0] sm:$0xe]
      %v393 = vld [vmem:[%s333 + $0xb0] sm:$0xe]
      %v394 = vld [vmem:[%s333 + $0xc0] sm:$0xe]
      %v395 = vld [vmem:[%s333 + $0xd0] sm:$0xe]
      %v396 = vld [vmem:[%s333 + $0xe0] sm:$0xe]
      %v397 = vld [vmem:[%s333 + $0xf0] sm:$0xe]
      %v430 = vunpack.c.l.b16 %v198
      %v431 = vunpack.c.l.b16 %v199
      %v432 = vunpack.c.l.b16 %v200
      %v433 = vunpack.c.l.b16 %v201
      %v434 = vunpack.c.l.b16 %v202
      %v435 = vunpack.c.l.b16 %v203
      %v436 = vunpack.c.l.b16 %v204
      %v437 = vunpack.c.l.b16 %v205
      %v438 = vunpack.c.l.b16 %v206
      %v439 = vunpack.c.l.b16 %v207
      %v440 = vunpack.c.l.b16 %v208
      %v441 = vunpack.c.l.b16 %v209
      %v442 = vunpack.c.l.b16 %v210
      %v443 = vunpack.c.l.b16 %v211
      %v444 = vunpack.c.l.b16 %v212
      %v445 = vunpack.c.l.b16 %v213
      %v446 = vunpack.c.l.b16 %v214
      %v447 = vunpack.c.l.b16 %v215
      %v448 = vunpack.c.l.b16 %v216
      %v449 = vunpack.c.l.b16 %v217
      %v450 = vunpack.c.l.b16 %v218
      %v451 = vunpack.c.l.b16 %v219
      %v452 = vunpack.c.l.b16 %v220
      %v453 = vunpack.c.l.b16 %v221
      %v454 = vunpack.c.l.b16 %v222
      %v455 = vunpack.c.l.b16 %v223
      %v456 = vunpack.c.l.b16 %v224
      %v457 = vunpack.c.l.b16 %v225
      %v458 = vunpack.c.l.b16 %v226
      %v459 = vunpack.c.l.b16 %v227
      %v460 = vunpack.c.l.b16 %v228
      %v461 = vunpack.c.l.b16 %v229
      %v462 = vpack.c.b16 %v431, %v430
      %v463 = vpack.c.b16 %v433, %v432
      %v464 = vpack.c.b16 %v435, %v434
      %v465 = vpack.c.b16 %v437, %v436
      %v466 = vpack.c.b16 %v439, %v438
      %v467 = vpack.c.b16 %v441, %v440
      %v468 = vpack.c.b16 %v443, %v442
      %v469 = vpack.c.b16 %v445, %v444
      %v470 = vpack.c.b16 %v447, %v446
      %v471 = vpack.c.b16 %v449, %v448
      %v472 = vpack.c.b16 %v451, %v450
      %v473 = vpack.c.b16 %v453, %v452
      %v474 = vpack.c.b16 %v455, %v454
      %v475 = vpack.c.b16 %v457, %v456
      %v476 = vpack.c.b16 %v459, %v458
      %v477 = vpack.c.b16 %v461, %v460
      %v494 = vunpack.c.l.b16 %v230
      %v495 = vunpack.c.l.b16 %v231
      %v496 = vunpack.c.l.b16 %v232
      %v497 = vunpack.c.l.b16 %v233
      %v498 = vunpack.c.l.b16 %v234
      %v499 = vunpack.c.l.b16 %v235
      %v500 = vunpack.c.l.b16 %v236
      %v501 = vunpack.c.l.b16 %v237
      %v502 = vunpack.c.l.b16 %v238
      %v503 = vunpack.c.l.b16 %v239
      %v504 = vunpack.c.l.b16 %v240
      %v505 = vunpack.c.l.b16 %v241
      %v506 = vunpack.c.l.b16 %v242
      %v507 = vunpack.c.l.b16 %v243
      %v508 = vunpack.c.l.b16 %v244
      %v509 = vunpack.c.l.b16 %v245
      %v510 = vpack.c.b16 %v494, %v494
      %v511 = vpack.c.b16 %v495, %v495
      %v512 = vpack.c.b16 %v496, %v496
      %v513 = vpack.c.b16 %v497, %v497
      %v514 = vpack.c.b16 %v498, %v498
      %v515 = vpack.c.b16 %v499, %v499
      %v516 = vpack.c.b16 %v500, %v500
      %v517 = vpack.c.b16 %v501, %v501
      %v518 = vpack.c.b16 %v502, %v502
      %v519 = vpack.c.b16 %v503, %v503
      %v520 = vpack.c.b16 %v504, %v504
      %v521 = vpack.c.b16 %v505, %v505
      %v522 = vpack.c.b16 %v506, %v506
      %v523 = vpack.c.b16 %v507, %v507
      %v524 = vpack.c.b16 %v508, %v508
      %v525 = vpack.c.b16 %v509, %v509
      %vm526 = vsmask.f32 7424
      %v528 = vshrl.u32 %v462, 16
      %v530 = vshll.u32 %v462, 16
      %v532 = vrot.slane %v530, 1
      %v533 = vor.u32 %v528, %v532
      %v535 = vshll.u32 %v510, 16
      %v537 = vrot.slane %v535, 1
      %v538 = vsel %vm526, %v533, %v537
      %v540 = vshrl.u32 %v463, 16
      %v542 = vshll.u32 %v463, 16
      %v544 = vrot.slane %v542, 1
      %v545 = vor.u32 %v540, %v544
      %v547 = vshll.u32 %v511, 16
      %v549 = vrot.slane %v547, 1
      %v550 = vsel %vm526, %v545, %v549
      %v552 = vshrl.u32 %v464, 16
      %v554 = vshll.u32 %v464, 16
      %v556 = vrot.slane %v554, 1
      %v557 = vor.u32 %v552, %v556
      %v559 = vshll.u32 %v512, 16
      %v561 = vrot.slane %v559, 1
      %v562 = vsel %vm526, %v557, %v561
      %v564 = vshrl.u32 %v465, 16
      %v566 = vshll.u32 %v465, 16
      %v568 = vrot.slane %v566, 1
      %v569 = vor.u32 %v564, %v568
      %v571 = vshll.u32 %v513, 16
      %v573 = vrot.slane %v571, 1
      %v574 = vsel %vm526, %v569, %v573
      %v576 = vshrl.u32 %v466, 16
      %v578 = vshll.u32 %v466, 16
      %v580 = vrot.slane %v578, 1
      %v581 = vor.u32 %v576, %v580
      %v583 = vshll.u32 %v514, 16
      %v585 = vrot.slane %v583, 1
      %v586 = vsel %vm526, %v581, %v585
      %v588 = vshrl.u32 %v467, 16
      %v590 = vshll.u32 %v467, 16
      %v592 = vrot.slane %v590, 1
      %v593 = vor.u32 %v588, %v592
      %v595 = vshll.u32 %v515, 16
      %v597 = vrot.slane %v595, 1
      %v598 = vsel %vm526, %v593, %v597
      %v600 = vshrl.u32 %v468, 16
      %v602 = vshll.u32 %v468, 16
      %v604 = vrot.slane %v602, 1
      %v605 = vor.u32 %v600, %v604
      %v607 = vshll.u32 %v516, 16
      %v609 = vrot.slane %v607, 1
      %v610 = vsel %vm526, %v605, %v609
      %v612 = vshrl.u32 %v469, 16
      %v614 = vshll.u32 %v469, 16
      %v616 = vrot.slane %v614, 1
      %v617 = vor.u32 %v612, %v616
      %v619 = vshll.u32 %v517, 16
      %v621 = vrot.slane %v619, 1
      %v622 = vsel %vm526, %v617, %v621
      %v624 = vshrl.u32 %v470, 16
      %v626 = vshll.u32 %v470, 16
      %v628 = vrot.slane %v626, 1
      %v629 = vor.u32 %v624, %v628
      %v631 = vshll.u32 %v518, 16
      %v633 = vrot.slane %v631, 1
      %v634 = vsel %vm526, %v629, %v633
      %v636 = vshrl.u32 %v471, 16
      %v638 = vshll.u32 %v471, 16
      %v640 = vrot.slane %v638, 1
      %v641 = vor.u32 %v636, %v640
      %v643 = vshll.u32 %v519, 16
      %v645 = vrot.slane %v643, 1
      %v646 = vsel %vm526, %v641, %v645
      %v648 = vshrl.u32 %v472, 16
      %v650 = vshll.u32 %v472, 16
      %v652 = vrot.slane %v650, 1
      %v653 = vor.u32 %v648, %v652
      %v655 = vshll.u32 %v520, 16
      %v657 = vrot.slane %v655, 1
      %v658 = vsel %vm526, %v653, %v657
      %v660 = vshrl.u32 %v473, 16
      %v662 = vshll.u32 %v473, 16
      %v664 = vrot.slane %v662, 1
      %v665 = vor.u32 %v660, %v664
      %v667 = vshll.u32 %v521, 16
      %v669 = vrot.slane %v667, 1
      %v670 = vsel %vm526, %v665, %v669
      %v672 = vshrl.u32 %v474, 16
      %v674 = vshll.u32 %v474, 16
      %v676 = vrot.slane %v674, 1
      %v677 = vor.u32 %v672, %v676
      %v679 = vshll.u32 %v522, 16
      %v681 = vrot.slane %v679, 1
      %v682 = vsel %vm526, %v677, %v681
      %v684 = vshrl.u32 %v475, 16
      %v686 = vshll.u32 %v475, 16
      %v688 = vrot.slane %v686, 1
      %v689 = vor.u32 %v684, %v688
      %v691 = vshll.u32 %v523, 16
      %v693 = vrot.slane %v691, 1
      %v694 = vsel %vm526, %v689, %v693
      %v696 = vshrl.u32 %v476, 16
      %v698 = vshll.u32 %v476, 16
      %v700 = vrot.slane %v698, 1
      %v701 = vor.u32 %v696, %v700
      %v703 = vshll.u32 %v524, 16
      %v705 = vrot.slane %v703, 1
      %v706 = vsel %vm526, %v701, %v705
      %v708 = vshrl.u32 %v477, 16
      %v710 = vshll.u32 %v477, 16
      %v712 = vrot.slane %v710, 1
      %v713 = vor.u32 %v708, %v712
      %v715 = vshll.u32 %v525, 16
      %v717 = vrot.slane %v715, 1
      %v718 = vsel %vm526, %v713, %v717
      %719 = vrot.lane.b32.xlu0 %v538, 4
      %v720 = vpop.permute.xlu0 %719
      %721 = vrot.lane.b32.xlu0 %v550, 4
      %v722 = vpop.permute.xlu0 %721
      %723 = vrot.lane.b32.xlu0 %v562, 4
      %v724 = vpop.permute.xlu0 %723
      %725 = vrot.lane.b32.xlu0 %v574, 4
      %v726 = vpop.permute.xlu0 %725
      %727 = vrot.lane.b32.xlu0 %v586, 4
      %v728 = vpop.permute.xlu0 %727
      %729 = vrot.lane.b32.xlu0 %v598, 4
      %v730 = vpop.permute.xlu0 %729
      %731 = vrot.lane.b32.xlu0 %v610, 4
      %v732 = vpop.permute.xlu0 %731
      %733 = vrot.lane.b32.xlu0 %v622, 4
      %v734 = vpop.permute.xlu0 %733
      %735 = vrot.lane.b32.xlu0 %v634, 4
      %v736 = vpop.permute.xlu0 %735
      %737 = vrot.lane.b32.xlu0 %v646, 4
      %v738 = vpop.permute.xlu0 %737
      %739 = vrot.lane.b32.xlu0 %v658, 4
      %v740 = vpop.permute.xlu0 %739
      %741 = vrot.lane.b32.xlu0 %v670, 4
      %v742 = vpop.permute.xlu0 %741
      %743 = vrot.lane.b32.xlu0 %v682, 4
      %v744 = vpop.permute.xlu0 %743
      %745 = vrot.lane.b32.xlu0 %v694, 4
      %v746 = vpop.permute.xlu0 %745
      %747 = vrot.lane.b32.xlu0 %v706, 4
      %v748 = vpop.permute.xlu0 %747
      %749 = vrot.lane.b32.xlu0 %v718, 4
      %v750 = vpop.permute.xlu0 %749
      %v767 = vunpack.c.l.b16 %v246
      %v768 = vunpack.c.l.b16 %v247
      %v769 = vunpack.c.l.b16 %v248
      %v770 = vunpack.c.l.b16 %v249
      %v771 = vunpack.c.l.b16 %v250
      %v772 = vunpack.c.l.b16 %v251
      %v773 = vunpack.c.l.b16 %v252
      %v774 = vunpack.c.l.b16 %v253
      %v775 = vunpack.c.l.b16 %v254
      %v776 = vunpack.c.l.b16 %v255
      %v777 = vunpack.c.l.b16 %v256
      %v778 = vunpack.c.l.b16 %v257
      %v779 = vunpack.c.l.b16 %v258
      %v780 = vunpack.c.l.b16 %v259
      %v781 = vunpack.c.l.b16 %v260
      %v782 = vunpack.c.l.b16 %v261
      %v783 = vpack.c.b16 %v431, %v767
      %v784 = vpack.c.b16 %v433, %v768
      %v785 = vpack.c.b16 %v435, %v769
      %v786 = vpack.c.b16 %v437, %v770
      %v787 = vpack.c.b16 %v439, %v771
      %v788 = vpack.c.b16 %v441, %v772
      %v789 = vpack.c.b16 %v443, %v773
      %v790 = vpack.c.b16 %v445, %v774
      %v791 = vpack.c.b16 %v447, %v775
      %v792 = vpack.c.b16 %v449, %v776
      %v793 = vpack.c.b16 %v451, %v777
      %v794 = vpack.c.b16 %v453, %v778
      %v795 = vpack.c.b16 %v455, %v779
      %v796 = vpack.c.b16 %v457, %v780
      %v797 = vpack.c.b16 %v459, %v781
      %v798 = vpack.c.b16 %v461, %v782
      %vm799 = vcmask 1046528
      %v800 = vrot.slane %v783, 1
      %v801 = vrot.slane %v510, 1
      %v802 = vsel %vm799, %v800, %v801
      %v803 = vrot.slane %v784, 1
      %v804 = vrot.slane %v511, 1
      %v805 = vsel %vm799, %v803, %v804
      %v806 = vrot.slane %v785, 1
      %v807 = vrot.slane %v512, 1
      %v808 = vsel %vm799, %v806, %v807
      %v809 = vrot.slane %v786, 1
      %v810 = vrot.slane %v513, 1
      %v811 = vsel %vm799, %v809, %v810
      %v812 = vrot.slane %v787, 1
      %v813 = vrot.slane %v514, 1
      %v814 = vsel %vm799, %v812, %v813
      %v815 = vrot.slane %v788, 1
      %v816 = vrot.slane %v515, 1
      %v817 = vsel %vm799, %v815, %v816
      %v818 = vrot.slane %v789, 1
      %v819 = vrot.slane %v516, 1
      %v820 = vsel %vm799, %v818, %v819
      %v821 = vrot.slane %v790, 1
      %v822 = vrot.slane %v517, 1
      %v823 = vsel %vm799, %v821, %v822
      %v824 = vrot.slane %v791, 1
      %v825 = vrot.slane %v518, 1
      %v826 = vsel %vm799, %v824, %v825
      %v827 = vrot.slane %v792, 1
      %v828 = vrot.slane %v519, 1
      %v829 = vsel %vm799, %v827, %v828
      %v830 = vrot.slane %v793, 1
      %v831 = vrot.slane %v520, 1
      %v832 = vsel %vm799, %v830, %v831
      %v833 = vrot.slane %v794, 1
      %v834 = vrot.slane %v521, 1
      %v835 = vsel %vm799, %v833, %v834
      %v836 = vrot.slane %v795, 1
      %v837 = vrot.slane %v522, 1
      %v838 = vsel %vm799, %v836, %v837
      %v839 = vrot.slane %v796, 1
      %v840 = vrot.slane %v523, 1
      %v841 = vsel %vm799, %v839, %v840
      %v842 = vrot.slane %v797, 1
      %v843 = vrot.slane %v524, 1
      %v844 = vsel %vm799, %v842, %v843
      %v845 = vrot.slane %v798, 1
      %v846 = vrot.slane %v525, 1
      %v847 = vsel %vm799, %v845, %v846
      %848 = vrot.lane.b32.xlu0 %v802, 8
      %v849 = vpop.permute.xlu0 %848
      %850 = vrot.lane.b32.xlu0 %v805, 8
      %v851 = vpop.permute.xlu0 %850
      %852 = vrot.lane.b32.xlu0 %v808, 8
      %v853 = vpop.permute.xlu0 %852
      %854 = vrot.lane.b32.xlu0 %v811, 8
      %v855 = vpop.permute.xlu0 %854
      %856 = vrot.lane.b32.xlu0 %v814, 8
      %v857 = vpop.permute.xlu0 %856
      %858 = vrot.lane.b32.xlu0 %v817, 8
      %v859 = vpop.permute.xlu0 %858
      %860 = vrot.lane.b32.xlu0 %v820, 8
      %v861 = vpop.permute.xlu0 %860
      %862 = vrot.lane.b32.xlu0 %v823, 8
      %v863 = vpop.permute.xlu0 %862
      %864 = vrot.lane.b32.xlu0 %v826, 8
      %v865 = vpop.permute.xlu0 %864
      %866 = vrot.lane.b32.xlu0 %v829, 8
      %v867 = vpop.permute.xlu0 %866
      %868 = vrot.lane.b32.xlu0 %v832, 8
      %v869 = vpop.permute.xlu0 %868
      %870 = vrot.lane.b32.xlu0 %v835, 8
      %v871 = vpop.permute.xlu0 %870
      %872 = vrot.lane.b32.xlu0 %v838, 8
      %v873 = vpop.permute.xlu0 %872
      %874 = vrot.lane.b32.xlu0 %v841, 8
      %v875 = vpop.permute.xlu0 %874
      %876 = vrot.lane.b32.xlu0 %v844, 8
      %v877 = vpop.permute.xlu0 %876
      %878 = vrot.lane.b32.xlu0 %v847, 8
      %v879 = vpop.permute.xlu0 %878
      %v912 = vunpack.c.l.b16 %v266
      %v913 = vunpack.c.l.b16 %v267
      %v914 = vunpack.c.l.b16 %v268
      %v915 = vunpack.c.l.b16 %v269
      %v916 = vunpack.c.l.b16 %v270
      %v917 = vunpack.c.l.b16 %v271
      %v918 = vunpack.c.l.b16 %v272
      %v919 = vunpack.c.l.b16 %v273
      %v920 = vunpack.c.l.b16 %v274
      %v921 = vunpack.c.l.b16 %v275
      %v922 = vunpack.c.l.b16 %v276
      %v923 = vunpack.c.l.b16 %v277
      %v924 = vunpack.c.l.b16 %v278
      %v925 = vunpack.c.l.b16 %v279
      %v926 = vunpack.c.l.b16 %v280
      %v927 = vunpack.c.l.b16 %v281
      %v928 = vunpack.c.l.b16 %v282
      %v929 = vunpack.c.l.b16 %v283
      %v930 = vunpack.c.l.b16 %v284
      %v931 = vunpack.c.l.b16 %v285
      %v932 = vunpack.c.l.b16 %v286
      %v933 = vunpack.c.l.b16 %v287
      %v934 = vunpack.c.l.b16 %v288
      %v935 = vunpack.c.l.b16 %v289
      %v936 = vunpack.c.l.b16 %v290
      %v937 = vunpack.c.l.b16 %v291
      %v938 = vunpack.c.l.b16 %v292
      %v939 = vunpack.c.l.b16 %v293
      %v940 = vunpack.c.l.b16 %v294
      %v941 = vunpack.c.l.b16 %v295
      %v942 = vunpack.c.l.b16 %v296
      %v943 = vunpack.c.l.b16 %v297
      %v944 = vpack.c.b16 %v913, %v912
      %v945 = vpack.c.b16 %v915, %v914
      %v946 = vpack.c.b16 %v917, %v916
      %v947 = vpack.c.b16 %v919, %v918
      %v948 = vpack.c.b16 %v921, %v920
      %v949 = vpack.c.b16 %v923, %v922
      %v950 = vpack.c.b16 %v925, %v924
      %v951 = vpack.c.b16 %v927, %v926
      %v952 = vpack.c.b16 %v929, %v928
      %v953 = vpack.c.b16 %v931, %v930
      %v954 = vpack.c.b16 %v933, %v932
      %v955 = vpack.c.b16 %v935, %v934
      %v956 = vpack.c.b16 %v937, %v936
      %v957 = vpack.c.b16 %v939, %v938
      %v958 = vpack.c.b16 %v941, %v940
      %v959 = vpack.c.b16 %v943, %v942
      %960 = vrot.lane.b32.xlu0 %v944, 12
      %v961 = vpop.permute.xlu0 %960
      %962 = vrot.lane.b32.xlu0 %v945, 12
      %v963 = vpop.permute.xlu0 %962
      %964 = vrot.lane.b32.xlu0 %v946, 12
      %v965 = vpop.permute.xlu0 %964
      %966 = vrot.lane.b32.xlu0 %v947, 12
      %v967 = vpop.permute.xlu0 %966
      %968 = vrot.lane.b32.xlu0 %v948, 12
      %v969 = vpop.permute.xlu0 %968
      %970 = vrot.lane.b32.xlu0 %v949, 12
      %v971 = vpop.permute.xlu0 %970
      %972 = vrot.lane.b32.xlu0 %v950, 12
      %v973 = vpop.permute.xlu0 %972
      %974 = vrot.lane.b32.xlu0 %v951, 12
      %v975 = vpop.permute.xlu0 %974
      %976 = vrot.lane.b32.xlu0 %v952, 12
      %v977 = vpop.permute.xlu0 %976
      %978 = vrot.lane.b32.xlu0 %v953, 12
      %v979 = vpop.permute.xlu0 %978
      %980 = vrot.lane.b32.xlu0 %v954, 12
      %v981 = vpop.permute.xlu0 %980
      %982 = vrot.lane.b32.xlu0 %v955, 12
      %v983 = vpop.permute.xlu0 %982
      %984 = vrot.lane.b32.xlu0 %v956, 12
      %v985 = vpop.permute.xlu0 %984
      %986 = vrot.lane.b32.xlu0 %v957, 12
      %v987 = vpop.permute.xlu0 %986
      %988 = vrot.lane.b32.xlu0 %v958, 12
      %v989 = vpop.permute.xlu0 %988
      %990 = vrot.lane.b32.xlu0 %v959, 12
      %v991 = vpop.permute.xlu0 %990
      %v1008 = vunpack.c.l.b16 %v298
      %v1009 = vunpack.c.l.b16 %v299
      %v1010 = vunpack.c.l.b16 %v300
      %v1011 = vunpack.c.l.b16 %v301
      %v1012 = vunpack.c.l.b16 %v302
      %v1013 = vunpack.c.l.b16 %v303
      %v1014 = vunpack.c.l.b16 %v304
      %v1015 = vunpack.c.l.b16 %v305
      %v1016 = vunpack.c.l.b16 %v306
      %v1017 = vunpack.c.l.b16 %v307
      %v1018 = vunpack.c.l.b16 %v308
      %v1019 = vunpack.c.l.b16 %v309
      %v1020 = vunpack.c.l.b16 %v310
      %v1021 = vunpack.c.l.b16 %v311
      %v1022 = vunpack.c.l.b16 %v312
      %v1023 = vunpack.c.l.b16 %v313
      %v1024 = vpack.c.b16 %v1008, %v1008
      %v1025 = vpack.c.b16 %v1009, %v1009
      %v1026 = vpack.c.b16 %v1010, %v1010
      %v1027 = vpack.c.b16 %v1011, %v1011
      %v1028 = vpack.c.b16 %v1012, %v1012
      %v1029 = vpack.c.b16 %v1013, %v1013
      %v1030 = vpack.c.b16 %v1014, %v1014
      %v1031 = vpack.c.b16 %v1015, %v1015
      %v1032 = vpack.c.b16 %v1016, %v1016
      %v1033 = vpack.c.b16 %v1017, %v1017
      %v1034 = vpack.c.b16 %v1018, %v1018
      %v1035 = vpack.c.b16 %v1019, %v1019
      %v1036 = vpack.c.b16 %v1020, %v1020
      %v1037 = vpack.c.b16 %v1021, %v1021
      %v1038 = vpack.c.b16 %v1022, %v1022
      %v1039 = vpack.c.b16 %v1023, %v1023
      %v1041 = vshrl.u32 %v944, 16
      %v1043 = vshll.u32 %v944, 16
      %v1045 = vrot.slane %v1043, 1
      %v1046 = vor.u32 %v1041, %v1045
      %v1048 = vshll.u32 %v1024, 16
      %v1050 = vrot.slane %v1048, 1
      %v1051 = vsel %vm526, %v1046, %v1050
      %v1053 = vshrl.u32 %v945, 16
      %v1055 = vshll.u32 %v945, 16
      %v1057 = vrot.slane %v1055, 1
      %v1058 = vor.u32 %v1053, %v1057
      %v1060 = vshll.u32 %v1025, 16
      %v1062 = vrot.slane %v1060, 1
      %v1063 = vsel %vm526, %v1058, %v1062
      %v1065 = vshrl.u32 %v946, 16
      %v1067 = vshll.u32 %v946, 16
      %v1069 = vrot.slane %v1067, 1
      %v1070 = vor.u32 %v1065, %v1069
      %v1072 = vshll.u32 %v1026, 16
      %v1074 = vrot.slane %v1072, 1
      %v1075 = vsel %vm526, %v1070, %v1074
      %v1077 = vshrl.u32 %v947, 16
      %v1079 = vshll.u32 %v947, 16
      %v1081 = vrot.slane %v1079, 1
      %v1082 = vor.u32 %v1077, %v1081
      %v1084 = vshll.u32 %v1027, 16
      %v1086 = vrot.slane %v1084, 1
      %v1087 = vsel %vm526, %v1082, %v1086
      %v1089 = vshrl.u32 %v948, 16
      %v1091 = vshll.u32 %v948, 16
      %v1093 = vrot.slane %v1091, 1
      %v1094 = vor.u32 %v1089, %v1093
      %v1096 = vshll.u32 %v1028, 16
      %v1098 = vrot.slane %v1096, 1
      %v1099 = vsel %vm526, %v1094, %v1098
      %v1101 = vshrl.u32 %v949, 16
      %v1103 = vshll.u32 %v949, 16
      %v1105 = vrot.slane %v1103, 1
      %v1106 = vor.u32 %v1101, %v1105
      %v1108 = vshll.u32 %v1029, 16
      %v1110 = vrot.slane %v1108, 1
      %v1111 = vsel %vm526, %v1106, %v1110
      %v1113 = vshrl.u32 %v950, 16
      %v1115 = vshll.u32 %v950, 16
      %v1117 = vrot.slane %v1115, 1
      %v1118 = vor.u32 %v1113, %v1117
      %v1120 = vshll.u32 %v1030, 16
      %v1122 = vrot.slane %v1120, 1
      %v1123 = vsel %vm526, %v1118, %v1122
      %v1125 = vshrl.u32 %v951, 16
      %v1127 = vshll.u32 %v951, 16
      %v1129 = vrot.slane %v1127, 1
      %v1130 = vor.u32 %v1125, %v1129
      %v1132 = vshll.u32 %v1031, 16
      %v1134 = vrot.slane %v1132, 1
      %v1135 = vsel %vm526, %v1130, %v1134
      %v1137 = vshrl.u32 %v952, 16
      %v1139 = vshll.u32 %v952, 16
      %v1141 = vrot.slane %v1139, 1
      %v1142 = vor.u32 %v1137, %v1141
      %v1144 = vshll.u32 %v1032, 16
      %v1146 = vrot.slane %v1144, 1
      %v1147 = vsel %vm526, %v1142, %v1146
      %v1149 = vshrl.u32 %v953, 16
      %v1151 = vshll.u32 %v953, 16
      %v1153 = vrot.slane %v1151, 1
      %v1154 = vor.u32 %v1149, %v1153
      %v1156 = vshll.u32 %v1033, 16
      %v1158 = vrot.slane %v1156, 1
      %v1159 = vsel %vm526, %v1154, %v1158
      %v1161 = vshrl.u32 %v954, 16
      %v1163 = vshll.u32 %v954, 16
      %v1165 = vrot.slane %v1163, 1
      %v1166 = vor.u32 %v1161, %v1165
      %v1168 = vshll.u32 %v1034, 16
      %v1170 = vrot.slane %v1168, 1
      %v1171 = vsel %vm526, %v1166, %v1170
      %v1173 = vshrl.u32 %v955, 16
      %v1175 = vshll.u32 %v955, 16
      %v1177 = vrot.slane %v1175, 1
      %v1178 = vor.u32 %v1173, %v1177
      %v1180 = vshll.u32 %v1035, 16
      %v1182 = vrot.slane %v1180, 1
      %v1183 = vsel %vm526, %v1178, %v1182
      %v1185 = vshrl.u32 %v956, 16
      %v1187 = vshll.u32 %v956, 16
      %v1189 = vrot.slane %v1187, 1
      %v1190 = vor.u32 %v1185, %v1189
      %v1192 = vshll.u32 %v1036, 16
      %v1194 = vrot.slane %v1192, 1
      %v1195 = vsel %vm526, %v1190, %v1194
      %v1197 = vshrl.u32 %v957, 16
      %v1199 = vshll.u32 %v957, 16
      %v1201 = vrot.slane %v1199, 1
      %v1202 = vor.u32 %v1197, %v1201
      %v1204 = vshll.u32 %v1037, 16
      %v1206 = vrot.slane %v1204, 1
      %v1207 = vsel %vm526, %v1202, %v1206
      %v1209 = vshrl.u32 %v958, 16
      %v1211 = vshll.u32 %v958, 16
      %v1213 = vrot.slane %v1211, 1
      %v1214 = vor.u32 %v1209, %v1213
      %v1216 = vshll.u32 %v1038, 16
      %v1218 = vrot.slane %v1216, 1
      %v1219 = vsel %vm526, %v1214, %v1218
      %v1221 = vshrl.u32 %v959, 16
      %v1223 = vshll.u32 %v959, 16
      %v1225 = vrot.slane %v1223, 1
      %v1226 = vor.u32 %v1221, %v1225
      %v1228 = vshll.u32 %v1039, 16
      %v1230 = vrot.slane %v1228, 1
      %v1231 = vsel %vm526, %v1226, %v1230
      %1232 = vrot.lane.b32.xlu0 %v1051, 16
      %v1233 = vpop.permute.xlu0 %1232
      %1234 = vrot.lane.b32.xlu0 %v1063, 16
      %v1235 = vpop.permute.xlu0 %1234
      %1236 = vrot.lane.b32.xlu0 %v1075, 16
      %v1237 = vpop.permute.xlu0 %1236
      %1238 = vrot.lane.b32.xlu0 %v1087, 16
      %v1239 = vpop.permute.xlu0 %1238
      %1240 = vrot.lane.b32.xlu0 %v1099, 16
      %v1241 = vpop.permute.xlu0 %1240
      %1242 = vrot.lane.b32.xlu0 %v1111, 16
      %v1243 = vpop.permute.xlu0 %1242
      %1244 = vrot.lane.b32.xlu0 %v1123, 16
      %v1245 = vpop.permute.xlu0 %1244
      %1246 = vrot.lane.b32.xlu0 %v1135, 16
      %v1247 = vpop.permute.xlu0 %1246
      %1248 = vrot.lane.b32.xlu0 %v1147, 16
      %v1249 = vpop.permute.xlu0 %1248
      %1250 = vrot.lane.b32.xlu0 %v1159, 16
      %v1251 = vpop.permute.xlu0 %1250
      %1252 = vrot.lane.b32.xlu0 %v1171, 16
      %v1253 = vpop.permute.xlu0 %1252
      %1254 = vrot.lane.b32.xlu0 %v1183, 16
      %v1255 = vpop.permute.xlu0 %1254
      %1256 = vrot.lane.b32.xlu0 %v1195, 16
      %v1257 = vpop.permute.xlu0 %1256
      %1258 = vrot.lane.b32.xlu0 %v1207, 16
      %v1259 = vpop.permute.xlu0 %1258
      %1260 = vrot.lane.b32.xlu0 %v1219, 16
      %v1261 = vpop.permute.xlu0 %1260
      %1262 = vrot.lane.b32.xlu0 %v1231, 16
      %v1263 = vpop.permute.xlu0 %1262
      %v1280 = vunpack.c.l.b16 %v314
      %v1281 = vunpack.c.l.b16 %v315
      %v1282 = vunpack.c.l.b16 %v316
      %v1283 = vunpack.c.l.b16 %v317
      %v1284 = vunpack.c.l.b16 %v318
      %v1285 = vunpack.c.l.b16 %v319
      %v1286 = vunpack.c.l.b16 %v320
      %v1287 = vunpack.c.l.b16 %v321
      %v1288 = vunpack.c.l.b16 %v322
      %v1289 = vunpack.c.l.b16 %v323
      %v1290 = vunpack.c.l.b16 %v324
      %v1291 = vunpack.c.l.b16 %v325
      %v1292 = vunpack.c.l.b16 %v326
      %v1293 = vunpack.c.l.b16 %v327
      %v1294 = vunpack.c.l.b16 %v328
      %v1295 = vunpack.c.l.b16 %v329
      %v1296 = vpack.c.b16 %v913, %v1280
      %v1297 = vpack.c.b16 %v915, %v1281
      %v1298 = vpack.c.b16 %v917, %v1282
      %v1299 = vpack.c.b16 %v919, %v1283
      %v1300 = vpack.c.b16 %v921, %v1284
      %v1301 = vpack.c.b16 %v923, %v1285
      %v1302 = vpack.c.b16 %v925, %v1286
      %v1303 = vpack.c.b16 %v927, %v1287
      %v1304 = vpack.c.b16 %v929, %v1288
      %v1305 = vpack.c.b16 %v931, %v1289
      %v1306 = vpack.c.b16 %v933, %v1290
      %v1307 = vpack.c.b16 %v935, %v1291
      %v1308 = vpack.c.b16 %v937, %v1292
      %v1309 = vpack.c.b16 %v939, %v1293
      %v1310 = vpack.c.b16 %v941, %v1294
      %v1311 = vpack.c.b16 %v943, %v1295
      %v1312 = vrot.slane %v1296, 1
      %v1313 = vrot.slane %v1024, 1
      %v1314 = vsel %vm799, %v1312, %v1313
      %v1315 = vrot.slane %v1297, 1
      %v1316 = vrot.slane %v1025, 1
      %v1317 = vsel %vm799, %v1315, %v1316
      %v1318 = vrot.slane %v1298, 1
      %v1319 = vrot.slane %v1026, 1
      %v1320 = vsel %vm799, %v1318, %v1319
      %v1321 = vrot.slane %v1299, 1
      %v1322 = vrot.slane %v1027, 1
      %v1323 = vsel %vm799, %v1321, %v1322
      %v1324 = vrot.slane %v1300, 1
      %v1325 = vrot.slane %v1028, 1
      %v1326 = vsel %vm799, %v1324, %v1325
      %v1327 = vrot.slane %v1301, 1
      %v1328 = vrot.slane %v1029, 1
      %v1329 = vsel %vm799, %v1327, %v1328
      %v1330 = vrot.slane %v1302, 1
      %v1331 = vrot.slane %v1030, 1
      %v1332 = vsel %vm799, %v1330, %v1331
      %v1333 = vrot.slane %v1303, 1
      %v1334 = vrot.slane %v1031, 1
      %v1335 = vsel %vm799, %v1333, %v1334
      %v1336 = vrot.slane %v1304, 1
      %v1337 = vrot.slane %v1032, 1
      %v1338 = vsel %vm799, %v1336, %v1337
      %v1339 = vrot.slane %v1305, 1
      %v1340 = vrot.slane %v1033, 1
      %v1341 = vsel %vm799, %v1339, %v1340
      %v1342 = vrot.slane %v1306, 1
      %v1343 = vrot.slane %v1034, 1
      %v1344 = vsel %vm799, %v1342, %v1343
      %v1345 = vrot.slane %v1307, 1
      %v1346 = vrot.slane %v1035, 1
      %v1347 = vsel %vm799, %v1345, %v1346
      %v1348 = vrot.slane %v1308, 1
      %v1349 = vrot.slane %v1036, 1
      %v1350 = vsel %vm799, %v1348, %v1349
      %v1351 = vrot.slane %v1309, 1
      %v1352 = vrot.slane %v1037, 1
      %v1353 = vsel %vm799, %v1351, %v1352
      %v1354 = vrot.slane %v1310, 1
      %v1355 = vrot.slane %v1038, 1
      %v1356 = vsel %vm799, %v1354, %v1355
      %v1357 = vrot.slane %v1311, 1
      %v1358 = vrot.slane %v1039, 1
      %v1359 = vsel %vm799, %v1357, %v1358
      %1360 = vrot.lane.b32.xlu0 %v1314, 20
      %v1361 = vpop.permute.xlu0 %1360
      %1362 = vrot.lane.b32.xlu0 %v1317, 20
      %v1363 = vpop.permute.xlu0 %1362
      %1364 = vrot.lane.b32.xlu0 %v1320, 20
      %v1365 = vpop.permute.xlu0 %1364
      %1366 = vrot.lane.b32.xlu0 %v1323, 20
      %v1367 = vpop.permute.xlu0 %1366
      %1368 = vrot.lane.b32.xlu0 %v1326, 20
      %v1369 = vpop.permute.xlu0 %1368
      %1370 = vrot.lane.b32.xlu0 %v1329, 20
      %v1371 = vpop.permute.xlu0 %1370
      %1372 = vrot.lane.b32.xlu0 %v1332, 20
      %v1373 = vpop.permute.xlu0 %1372
      %1374 = vrot.lane.b32.xlu0 %v1335, 20
      %v1375 = vpop.permute.xlu0 %1374
      %1376 = vrot.lane.b32.xlu0 %v1338, 20
      %v1377 = vpop.permute.xlu0 %1376
      %1378 = vrot.lane.b32.xlu0 %v1341, 20
      %v1379 = vpop.permute.xlu0 %1378
      %1380 = vrot.lane.b32.xlu0 %v1344, 20
      %v1381 = vpop.permute.xlu0 %1380
      %1382 = vrot.lane.b32.xlu0 %v1347, 20
      %v1383 = vpop.permute.xlu0 %1382
      %1384 = vrot.lane.b32.xlu0 %v1350, 20
      %v1385 = vpop.permute.xlu0 %1384
      %1386 = vrot.lane.b32.xlu0 %v1353, 20
      %v1387 = vpop.permute.xlu0 %1386
      %1388 = vrot.lane.b32.xlu0 %v1356, 20
      %v1389 = vpop.permute.xlu0 %1388
      %1390 = vrot.lane.b32.xlu0 %v1359, 20
      %v1391 = vpop.permute.xlu0 %1390
      %v1424 = vunpack.c.l.b16 %v334
      %v1425 = vunpack.c.l.b16 %v335
      %v1426 = vunpack.c.l.b16 %v336
      %v1427 = vunpack.c.l.b16 %v337
      %v1428 = vunpack.c.l.b16 %v338
      %v1429 = vunpack.c.l.b16 %v339
      %v1430 = vunpack.c.l.b16 %v340
      %v1431 = vunpack.c.l.b16 %v341
      %v1432 = vunpack.c.l.b16 %v342
      %v1433 = vunpack.c.l.b16 %v343
      %v1434 = vunpack.c.l.b16 %v344
      %v1435 = vunpack.c.l.b16 %v345
      %v1436 = vunpack.c.l.b16 %v346
      %v1437 = vunpack.c.l.b16 %v347
      %v1438 = vunpack.c.l.b16 %v348
      %v1439 = vunpack.c.l.b16 %v349
      %v1440 = vunpack.c.l.b16 %v350
      %v1441 = vunpack.c.l.b16 %v351
      %v1442 = vunpack.c.l.b16 %v352
      %v1443 = vunpack.c.l.b16 %v353
      %v1444 = vunpack.c.l.b16 %v354
      %v1445 = vunpack.c.l.b16 %v355
      %v1446 = vunpack.c.l.b16 %v356
      %v1447 = vunpack.c.l.b16 %v357
      %v1448 = vunpack.c.l.b16 %v358
      %v1449 = vunpack.c.l.b16 %v359
      %v1450 = vunpack.c.l.b16 %v360
      %v1451 = vunpack.c.l.b16 %v361
      %v1452 = vunpack.c.l.b16 %v362
      %v1453 = vunpack.c.l.b16 %v363
      %v1454 = vunpack.c.l.b16 %v364
      %v1455 = vunpack.c.l.b16 %v365
      %v1456 = vpack.c.b16 %v1425, %v1424
      %v1457 = vpack.c.b16 %v1427, %v1426
      %v1458 = vpack.c.b16 %v1429, %v1428
      %v1459 = vpack.c.b16 %v1431, %v1430
      %v1460 = vpack.c.b16 %v1433, %v1432
      %v1461 = vpack.c.b16 %v1435, %v1434
      %v1462 = vpack.c.b16 %v1437, %v1436
      %v1463 = vpack.c.b16 %v1439, %v1438
      %v1464 = vpack.c.b16 %v1441, %v1440
      %v1465 = vpack.c.b16 %v1443, %v1442
      %v1466 = vpack.c.b16 %v1445, %v1444
      %v1467 = vpack.c.b16 %v1447, %v1446
      %v1468 = vpack.c.b16 %v1449, %v1448
      %v1469 = vpack.c.b16 %v1451, %v1450
      %v1470 = vpack.c.b16 %v1453, %v1452
      %v1471 = vpack.c.b16 %v1455, %v1454
      %1472 = vrot.lane.b32.xlu0 %v1456, 24
      %v1473 = vpop.permute.xlu0 %1472
      %1474 = vrot.lane.b32.xlu0 %v1457, 24
      %v1475 = vpop.permute.xlu0 %1474
      %1476 = vrot.lane.b32.xlu0 %v1458, 24
      %v1477 = vpop.permute.xlu0 %1476
      %1478 = vrot.lane.b32.xlu0 %v1459, 24
      %v1479 = vpop.permute.xlu0 %1478
      %1480 = vrot.lane.b32.xlu0 %v1460, 24
      %v1481 = vpop.permute.xlu0 %1480
      %1482 = vrot.lane.b32.xlu0 %v1461, 24
      %v1483 = vpop.permute.xlu0 %1482
      %1484 = vrot.lane.b32.xlu0 %v1462, 24
      %v1485 = vpop.permute.xlu0 %1484
      %1486 = vrot.lane.b32.xlu0 %v1463, 24
      %v1487 = vpop.permute.xlu0 %1486
      %1488 = vrot.lane.b32.xlu0 %v1464, 24
      %v1489 = vpop.permute.xlu0 %1488
      %1490 = vrot.lane.b32.xlu0 %v1465, 24
      %v1491 = vpop.permute.xlu0 %1490
      %1492 = vrot.lane.b32.xlu0 %v1466, 24
      %v1493 = vpop.permute.xlu0 %1492
      %1494 = vrot.lane.b32.xlu0 %v1467, 24
      %v1495 = vpop.permute.xlu0 %1494
      %1496 = vrot.lane.b32.xlu0 %v1468, 24
      %v1497 = vpop.permute.xlu0 %1496
      %1498 = vrot.lane.b32.xlu0 %v1469, 24
      %v1499 = vpop.permute.xlu0 %1498
      %1500 = vrot.lane.b32.xlu0 %v1470, 24
      %v1501 = vpop.permute.xlu0 %1500
      %1502 = vrot.lane.b32.xlu0 %v1471, 24
      %v1503 = vpop.permute.xlu0 %1502
      %v1520 = vunpack.c.l.b16 %v366
      %v1521 = vunpack.c.l.b16 %v367
      %v1522 = vunpack.c.l.b16 %v368
      %v1523 = vunpack.c.l.b16 %v369
      %v1524 = vunpack.c.l.b16 %v370
      %v1525 = vunpack.c.l.b16 %v371
      %v1526 = vunpack.c.l.b16 %v372
      %v1527 = vunpack.c.l.b16 %v373
      %v1528 = vunpack.c.l.b16 %v374
      %v1529 = vunpack.c.l.b16 %v375
      %v1530 = vunpack.c.l.b16 %v376
      %v1531 = vunpack.c.l.b16 %v377
      %v1532 = vunpack.c.l.b16 %v378
      %v1533 = vunpack.c.l.b16 %v379
      %v1534 = vunpack.c.l.b16 %v380
      %v1535 = vunpack.c.l.b16 %v381
      %v1536 = vpack.c.b16 %v1520, %v1520
      %v1537 = vpack.c.b16 %v1521, %v1521
      %v1538 = vpack.c.b16 %v1522, %v1522
      %v1539 = vpack.c.b16 %v1523, %v1523
      %v1540 = vpack.c.b16 %v1524, %v1524
      %v1541 = vpack.c.b16 %v1525, %v1525
      %v1542 = vpack.c.b16 %v1526, %v1526
      %v1543 = vpack.c.b16 %v1527, %v1527
      %v1544 = vpack.c.b16 %v1528, %v1528
      %v1545 = vpack.c.b16 %v1529, %v1529
      %v1546 = vpack.c.b16 %v1530, %v1530
      %v1547 = vpack.c.b16 %v1531, %v1531
      %v1548 = vpack.c.b16 %v1532, %v1532
      %v1549 = vpack.c.b16 %v1533, %v1533
      %v1550 = vpack.c.b16 %v1534, %v1534
      %v1551 = vpack.c.b16 %v1535, %v1535
      %v1553 = vshrl.u32 %v1456, 16
      %v1555 = vshll.u32 %v1456, 16
      %v1557 = vrot.slane %v1555, 1
      %v1558 = vor.u32 %v1553, %v1557
      %v1560 = vshll.u32 %v1536, 16
      %v1562 = vrot.slane %v1560, 1
      %v1563 = vsel %vm526, %v1558, %v1562
      %v1565 = vshrl.u32 %v1457, 16
      %v1567 = vshll.u32 %v1457, 16
      %v1569 = vrot.slane %v1567, 1
      %v1570 = vor.u32 %v1565, %v1569
      %v1572 = vshll.u32 %v1537, 16
      %v1574 = vrot.slane %v1572, 1
      %v1575 = vsel %vm526, %v1570, %v1574
      %v1577 = vshrl.u32 %v1458, 16
      %v1579 = vshll.u32 %v1458, 16
      %v1581 = vrot.slane %v1579, 1
      %v1582 = vor.u32 %v1577, %v1581
      %v1584 = vshll.u32 %v1538, 16
      %v1586 = vrot.slane %v1584, 1
      %v1587 = vsel %vm526, %v1582, %v1586
      %v1589 = vshrl.u32 %v1459, 16
      %v1591 = vshll.u32 %v1459, 16
      %v1593 = vrot.slane %v1591, 1
      %v1594 = vor.u32 %v1589, %v1593
      %v1596 = vshll.u32 %v1539, 16
      %v1598 = vrot.slane %v1596, 1
      %v1599 = vsel %vm526, %v1594, %v1598
      %v1601 = vshrl.u32 %v1460, 16
      %v1603 = vshll.u32 %v1460, 16
      %v1605 = vrot.slane %v1603, 1
      %v1606 = vor.u32 %v1601, %v1605
      %v1608 = vshll.u32 %v1540, 16
      %v1610 = vrot.slane %v1608, 1
      %v1611 = vsel %vm526, %v1606, %v1610
      %v1613 = vshrl.u32 %v1461, 16
      %v1615 = vshll.u32 %v1461, 16
      %v1617 = vrot.slane %v1615, 1
      %v1618 = vor.u32 %v1613, %v1617
      %v1620 = vshll.u32 %v1541, 16
      %v1622 = vrot.slane %v1620, 1
      %v1623 = vsel %vm526, %v1618, %v1622
      %v1625 = vshrl.u32 %v1462, 16
      %v1627 = vshll.u32 %v1462, 16
      %v1629 = vrot.slane %v1627, 1
      %v1630 = vor.u32 %v1625, %v1629
      %v1632 = vshll.u32 %v1542, 16
      %v1634 = vrot.slane %v1632, 1
      %v1635 = vsel %vm526, %v1630, %v1634
      %v1637 = vshrl.u32 %v1463, 16
      %v1639 = vshll.u32 %v1463, 16
      %v1641 = vrot.slane %v1639, 1
      %v1642 = vor.u32 %v1637, %v1641
      %v1644 = vshll.u32 %v1543, 16
      %v1646 = vrot.slane %v1644, 1
      %v1647 = vsel %vm526, %v1642, %v1646
      %v1649 = vshrl.u32 %v1464, 16
      %v1651 = vshll.u32 %v1464, 16
      %v1653 = vrot.slane %v1651, 1
      %v1654 = vor.u32 %v1649, %v1653
      %v1656 = vshll.u32 %v1544, 16
      %v1658 = vrot.slane %v1656, 1
      %v1659 = vsel %vm526, %v1654, %v1658
      %v1661 = vshrl.u32 %v1465, 16
      %v1663 = vshll.u32 %v1465, 16
      %v1665 = vrot.slane %v1663, 1
      %v1666 = vor.u32 %v1661, %v1665
      %v1668 = vshll.u32 %v1545, 16
      %v1670 = vrot.slane %v1668, 1
      %v1671 = vsel %vm526, %v1666, %v1670
      %v1673 = vshrl.u32 %v1466, 16
      %v1675 = vshll.u32 %v1466, 16
      %v1677 = vrot.slane %v1675, 1
      %v1678 = vor.u32 %v1673, %v1677
      %v1680 = vshll.u32 %v1546, 16
      %v1682 = vrot.slane %v1680, 1
      %v1683 = vsel %vm526, %v1678, %v1682
      %v1685 = vshrl.u32 %v1467, 16
      %v1687 = vshll.u32 %v1467, 16
      %v1689 = vrot.slane %v1687, 1
      %v1690 = vor.u32 %v1685, %v1689
      %v1692 = vshll.u32 %v1547, 16
      %v1694 = vrot.slane %v1692, 1
      %v1695 = vsel %vm526, %v1690, %v1694
      %v1697 = vshrl.u32 %v1468, 16
      %v1699 = vshll.u32 %v1468, 16
      %v1701 = vrot.slane %v1699, 1
      %v1702 = vor.u32 %v1697, %v1701
      %v1704 = vshll.u32 %v1548, 16
      %v1706 = vrot.slane %v1704, 1
      %v1707 = vsel %vm526, %v1702, %v1706
      %v1709 = vshrl.u32 %v1469, 16
      %v1711 = vshll.u32 %v1469, 16
      %v1713 = vrot.slane %v1711, 1
      %v1714 = vor.u32 %v1709, %v1713
      %v1716 = vshll.u32 %v1549, 16
      %v1718 = vrot.slane %v1716, 1
      %v1719 = vsel %vm526, %v1714, %v1718
      %v1721 = vshrl.u32 %v1470, 16
      %v1723 = vshll.u32 %v1470, 16
      %v1725 = vrot.slane %v1723, 1
      %v1726 = vor.u32 %v1721, %v1725
      %v1728 = vshll.u32 %v1550, 16
      %v1730 = vrot.slane %v1728, 1
      %v1731 = vsel %vm526, %v1726, %v1730
      %v1733 = vshrl.u32 %v1471, 16
      %v1735 = vshll.u32 %v1471, 16
      %v1737 = vrot.slane %v1735, 1
      %v1738 = vor.u32 %v1733, %v1737
      %v1740 = vshll.u32 %v1551, 16
      %v1742 = vrot.slane %v1740, 1
      %v1743 = vsel %vm526, %v1738, %v1742
      %1744 = vrot.lane.b32.xlu0 %v1563, 28
      %v1745 = vpop.permute.xlu0 %1744
      %1746 = vrot.lane.b32.xlu0 %v1575, 28
      %v1747 = vpop.permute.xlu0 %1746
      %1748 = vrot.lane.b32.xlu0 %v1587, 28
      %v1749 = vpop.permute.xlu0 %1748
      %1750 = vrot.lane.b32.xlu0 %v1599, 28
      %v1751 = vpop.permute.xlu0 %1750
      %1752 = vrot.lane.b32.xlu0 %v1611, 28
      %v1753 = vpop.permute.xlu0 %1752
      %1754 = vrot.lane.b32.xlu0 %v1623, 28
      %v1755 = vpop.permute.xlu0 %1754
      %1756 = vrot.lane.b32.xlu0 %v1635, 28
      %v1757 = vpop.permute.xlu0 %1756
      %1758 = vrot.lane.b32.xlu0 %v1647, 28
      %v1759 = vpop.permute.xlu0 %1758
      %1760 = vrot.lane.b32.xlu0 %v1659, 28
      %v1761 = vpop.permute.xlu0 %1760
      %1762 = vrot.lane.b32.xlu0 %v1671, 28
      %v1763 = vpop.permute.xlu0 %1762
      %1764 = vrot.lane.b32.xlu0 %v1683, 28
      %v1765 = vpop.permute.xlu0 %1764
      %1766 = vrot.lane.b32.xlu0 %v1695, 28
      %v1767 = vpop.permute.xlu0 %1766
      %1768 = vrot.lane.b32.xlu0 %v1707, 28
      %v1769 = vpop.permute.xlu0 %1768
      %1770 = vrot.lane.b32.xlu0 %v1719, 28
      %v1771 = vpop.permute.xlu0 %1770
      %1772 = vrot.lane.b32.xlu0 %v1731, 28
      %v1773 = vpop.permute.xlu0 %1772
      %1774 = vrot.lane.b32.xlu0 %v1743, 28
      %v1775 = vpop.permute.xlu0 %1774
      %v1792 = vunpack.c.l.b16 %v382
      %v1793 = vunpack.c.l.b16 %v383
      %v1794 = vunpack.c.l.b16 %v384
      %v1795 = vunpack.c.l.b16 %v385
      %v1796 = vunpack.c.l.b16 %v386
      %v1797 = vunpack.c.l.b16 %v387
      %v1798 = vunpack.c.l.b16 %v388
      %v1799 = vunpack.c.l.b16 %v389
      %v1800 = vunpack.c.l.b16 %v390
      %v1801 = vunpack.c.l.b16 %v391
      %v1802 = vunpack.c.l.b16 %v392
      %v1803 = vunpack.c.l.b16 %v393
      %v1804 = vunpack.c.l.b16 %v394
      %v1805 = vunpack.c.l.b16 %v395
      %v1806 = vunpack.c.l.b16 %v396
      %v1807 = vunpack.c.l.b16 %v397
      %v1808 = vpack.c.b16 %v1425, %v1792
      %v1809 = vpack.c.b16 %v1427, %v1793
      %v1810 = vpack.c.b16 %v1429, %v1794
      %v1811 = vpack.c.b16 %v1431, %v1795
      %v1812 = vpack.c.b16 %v1433, %v1796
      %v1813 = vpack.c.b16 %v1435, %v1797
      %v1814 = vpack.c.b16 %v1437, %v1798
      %v1815 = vpack.c.b16 %v1439, %v1799
      %v1816 = vpack.c.b16 %v1441, %v1800
      %v1817 = vpack.c.b16 %v1443, %v1801
      %v1818 = vpack.c.b16 %v1445, %v1802
      %v1819 = vpack.c.b16 %v1447, %v1803
      %v1820 = vpack.c.b16 %v1449, %v1804
      %v1821 = vpack.c.b16 %v1451, %v1805
      %v1822 = vpack.c.b16 %v1453, %v1806
      %v1823 = vpack.c.b16 %v1455, %v1807
      %v1824 = vrot.slane %v1808, 1
      %v1825 = vrot.slane %v1536, 1
      %v1826 = vsel %vm799, %v1824, %v1825
      %v1827 = vrot.slane %v1809, 1
      %v1828 = vrot.slane %v1537, 1
      %v1829 = vsel %vm799, %v1827, %v1828
      %v1830 = vrot.slane %v1810, 1
      %v1831 = vrot.slane %v1538, 1
      %v1832 = vsel %vm799, %v1830, %v1831
      %v1833 = vrot.slane %v1811, 1
      %v1834 = vrot.slane %v1539, 1
      %v1835 = vsel %vm799, %v1833, %v1834
      %v1836 = vrot.slane %v1812, 1
      %v1837 = vrot.slane %v1540, 1
      %v1838 = vsel %vm799, %v1836, %v1837
      %v1839 = vrot.slane %v1813, 1
      %v1840 = vrot.slane %v1541, 1
      %v1841 = vsel %vm799, %v1839, %v1840
      %v1842 = vrot.slane %v1814, 1
      %v1843 = vrot.slane %v1542, 1
      %v1844 = vsel %vm799, %v1842, %v1843
      %v1845 = vrot.slane %v1815, 1
      %v1846 = vrot.slane %v1543, 1
      %v1847 = vsel %vm799, %v1845, %v1846
      %v1848 = vrot.slane %v1816, 1
      %v1849 = vrot.slane %v1544, 1
      %v1850 = vsel %vm799, %v1848, %v1849
      %v1851 = vrot.slane %v1817, 1
      %v1852 = vrot.slane %v1545, 1
      %v1853 = vsel %vm799, %v1851, %v1852
      %v1854 = vrot.slane %v1818, 1
      %v1855 = vrot.slane %v1546, 1
      %v1856 = vsel %vm799, %v1854, %v1855
      %v1857 = vrot.slane %v1819, 1
      %v1858 = vrot.slane %v1547, 1
      %v1859 = vsel %vm799, %v1857, %v1858
      %v1860 = vrot.slane %v1820, 1
      %v1861 = vrot.slane %v1548, 1
      %v1862 = vsel %vm799, %v1860, %v1861
      %v1863 = vrot.slane %v1821, 1
      %v1864 = vrot.slane %v1549, 1
      %v1865 = vsel %vm799, %v1863, %v1864
      %v1866 = vrot.slane %v1822, 1
      %v1867 = vrot.slane %v1550, 1
      %v1868 = vsel %vm799, %v1866, %v1867
      %v1869 = vrot.slane %v1823, 1
      %v1870 = vrot.slane %v1551, 1
      %v1871 = vsel %vm799, %v1869, %v1870
      %1872 = vrot.lane.b32.xlu0 %v1826, 32
      %v1873 = vpop.permute.xlu0 %1872
      %1874 = vrot.lane.b32.xlu0 %v1829, 32
      %v1875 = vpop.permute.xlu0 %1874
      %1876 = vrot.lane.b32.xlu0 %v1832, 32
      %v1877 = vpop.permute.xlu0 %1876
      %1878 = vrot.lane.b32.xlu0 %v1835, 32
      %v1879 = vpop.permute.xlu0 %1878
      %1880 = vrot.lane.b32.xlu0 %v1838, 32
      %v1881 = vpop.permute.xlu0 %1880
      %1882 = vrot.lane.b32.xlu0 %v1841, 32
      %v1883 = vpop.permute.xlu0 %1882
      %1884 = vrot.lane.b32.xlu0 %v1844, 32
      %v1885 = vpop.permute.xlu0 %1884
      %1886 = vrot.lane.b32.xlu0 %v1847, 32
      %v1887 = vpop.permute.xlu0 %1886
      %1888 = vrot.lane.b32.xlu0 %v1850, 32
      %v1889 = vpop.permute.xlu0 %1888
      %1890 = vrot.lane.b32.xlu0 %v1853, 32
      %v1891 = vpop.permute.xlu0 %1890
      %1892 = vrot.lane.b32.xlu0 %v1856, 32
      %v1893 = vpop.permute.xlu0 %1892
      %1894 = vrot.lane.b32.xlu0 %v1859, 32
      %v1895 = vpop.permute.xlu0 %1894
      %1896 = vrot.lane.b32.xlu0 %v1862, 32
      %v1897 = vpop.permute.xlu0 %1896
      %1898 = vrot.lane.b32.xlu0 %v1865, 32
      %v1899 = vpop.permute.xlu0 %1898
      %1900 = vrot.lane.b32.xlu0 %v1868, 32
      %v1901 = vpop.permute.xlu0 %1900
      %1902 = vrot.lane.b32.xlu0 %v1871, 32
      %v1903 = vpop.permute.xlu0 %1902
      %vm1904 = vcmask 31744
      %v1906 = vsel %vm1904, %v462, %v720
      %v1908 = vsel %vm1904, %v463, %v722
      %v1910 = vsel %vm1904, %v464, %v724
      %v1912 = vsel %vm1904, %v465, %v726
      %v1914 = vsel %vm1904, %v466, %v728
      %v1916 = vsel %vm1904, %v467, %v730
      %v1918 = vsel %vm1904, %v468, %v732
      %v1920 = vsel %vm1904, %v469, %v734
      %v1922 = vsel %vm1904, %v470, %v736
      %v1924 = vsel %vm1904, %v471, %v738
      %v1926 = vsel %vm1904, %v472, %v740
      %v1928 = vsel %vm1904, %v473, %v742
      %v1930 = vsel %vm1904, %v474, %v744
      %v1932 = vsel %vm1904, %v475, %v746
      %v1934 = vsel %vm1904, %v476, %v748
      %v1936 = vsel %vm1904, %v477, %v750
      %vm1937 = vcmask 64512
      %v1939 = vsel %vm1937, %v1906, %v849
      %v1941 = vsel %vm1937, %v1908, %v851
      %v1943 = vsel %vm1937, %v1910, %v853
      %v1945 = vsel %vm1937, %v1912, %v855
      %v1947 = vsel %vm1937, %v1914, %v857
      %v1949 = vsel %vm1937, %v1916, %v859
      %v1951 = vsel %vm1937, %v1918, %v861
      %v1953 = vsel %vm1937, %v1920, %v863
      %v1955 = vsel %vm1937, %v1922, %v865
      %v1957 = vsel %vm1937, %v1924, %v867
      %v1959 = vsel %vm1937, %v1926, %v869
      %v1961 = vsel %vm1937, %v1928, %v871
      %v1963 = vsel %vm1937, %v1930, %v873
      %v1965 = vsel %vm1937, %v1932, %v875
      %v1967 = vsel %vm1937, %v1934, %v877
      %v1969 = vsel %vm1937, %v1936, %v879
      %vm1970 = vcmask 97280
      %v1972 = vsel %vm1970, %v1939, %v961
      %v1974 = vsel %vm1970, %v1941, %v963
      %v1976 = vsel %vm1970, %v1943, %v965
      %v1978 = vsel %vm1970, %v1945, %v967
      %v1980 = vsel %vm1970, %v1947, %v969
      %v1982 = vsel %vm1970, %v1949, %v971
      %v1984 = vsel %vm1970, %v1951, %v973
      %v1986 = vsel %vm1970, %v1953, %v975
      %v1988 = vsel %vm1970, %v1955, %v977
      %v1990 = vsel %vm1970, %v1957, %v979
      %v1992 = vsel %vm1970, %v1959, %v981
      %v1994 = vsel %vm1970, %v1961, %v983
      %v1996 = vsel %vm1970, %v1963, %v985
      %v1998 = vsel %vm1970, %v1965, %v987
      %v2000 = vsel %vm1970, %v1967, %v989
      %v2002 = vsel %vm1970, %v1969, %v991
      %vm2003 = vcmask 130048
      %v2005 = vsel %vm2003, %v1972, %v1233
      %v2007 = vsel %vm2003, %v1974, %v1235
      %v2009 = vsel %vm2003, %v1976, %v1237
      %v2011 = vsel %vm2003, %v1978, %v1239
      %v2013 = vsel %vm2003, %v1980, %v1241
      %v2015 = vsel %vm2003, %v1982, %v1243
      %v2017 = vsel %vm2003, %v1984, %v1245
      %v2019 = vsel %vm2003, %v1986, %v1247
      %v2021 = vsel %vm2003, %v1988, %v1249
      %v2023 = vsel %vm2003, %v1990, %v1251
      %v2025 = vsel %vm2003, %v1992, %v1253
      %v2027 = vsel %vm2003, %v1994, %v1255
      %v2029 = vsel %vm2003, %v1996, %v1257
      %v2031 = vsel %vm2003, %v1998, %v1259
      %v2033 = vsel %vm2003, %v2000, %v1261
      %v2035 = vsel %vm2003, %v2002, %v1263
      %vm2036 = vcmask 162816
      %v2038 = vsel %vm2036, %v2005, %v1361
      %v2040 = vsel %vm2036, %v2007, %v1363
      %v2042 = vsel %vm2036, %v2009, %v1365
      %v2044 = vsel %vm2036, %v2011, %v1367
      %v2046 = vsel %vm2036, %v2013, %v1369
      %v2048 = vsel %vm2036, %v2015, %v1371
      %v2050 = vsel %vm2036, %v2017, %v1373
      %v2052 = vsel %vm2036, %v2019, %v1375
      %v2054 = vsel %vm2036, %v2021, %v1377
      %v2056 = vsel %vm2036, %v2023, %v1379
      %v2058 = vsel %vm2036, %v2025, %v1381
      %v2060 = vsel %vm2036, %v2027, %v1383
      %v2062 = vsel %vm2036, %v2029, %v1385
      %v2064 = vsel %vm2036, %v2031, %v1387
      %v2066 = vsel %vm2036, %v2033, %v1389
      %v2068 = vsel %vm2036, %v2035, %v1391
      %vm2069 = vcmask 195584
      %v2071 = vsel %vm2069, %v2038, %v1473
      %v2073 = vsel %vm2069, %v2040, %v1475
      %v2075 = vsel %vm2069, %v2042, %v1477
      %v2077 = vsel %vm2069, %v2044, %v1479
      %v2079 = vsel %vm2069, %v2046, %v1481
      %v2081 = vsel %vm2069, %v2048, %v1483
      %v2083 = vsel %vm2069, %v2050, %v1485
      %v2085 = vsel %vm2069, %v2052, %v1487
      %v2087 = vsel %vm2069, %v2054, %v1489
      %v2089 = vsel %vm2069, %v2056, %v1491
      %v2091 = vsel %vm2069, %v2058, %v1493
      %v2093 = vsel %vm2069, %v2060, %v1495
      %v2095 = vsel %vm2069, %v2062, %v1497
      %v2097 = vsel %vm2069, %v2064, %v1499
      %v2099 = vsel %vm2069, %v2066, %v1501
      %v2101 = vsel %vm2069, %v2068, %v1503
      %vm2102 = vcmask 228352
      %v2104 = vsel %vm2102, %v2071, %v1745
      %v2106 = vsel %vm2102, %v2073, %v1747
      %v2108 = vsel %vm2102, %v2075, %v1749
      %v2110 = vsel %vm2102, %v2077, %v1751
      %v2112 = vsel %vm2102, %v2079, %v1753
      %v2114 = vsel %vm2102, %v2081, %v1755
      %v2116 = vsel %vm2102, %v2083, %v1757
      %v2118 = vsel %vm2102, %v2085, %v1759
      %v2120 = vsel %vm2102, %v2087, %v1761
      %v2122 = vsel %vm2102, %v2089, %v1763
      %v2124 = vsel %vm2102, %v2091, %v1765
      %v2126 = vsel %vm2102, %v2093, %v1767
      %v2128 = vsel %vm2102, %v2095, %v1769
      %v2130 = vsel %vm2102, %v2097, %v1771
      %v2132 = vsel %vm2102, %v2099, %v1773
      %v2134 = vsel %vm2102, %v2101, %v1775
      %vm2135 = vcmask 261120
      %v2137 = vsel %vm2135, %v2104, %v1873
      %v2139 = vsel %vm2135, %v2106, %v1875
      %v2141 = vsel %vm2135, %v2108, %v1877
      %v2143 = vsel %vm2135, %v2110, %v1879
      %v2145 = vsel %vm2135, %v2112, %v1881
      %v2147 = vsel %vm2135, %v2114, %v1883
      %v2149 = vsel %vm2135, %v2116, %v1885
      %v2151 = vsel %vm2135, %v2118, %v1887
      %v2153 = vsel %vm2135, %v2120, %v1889
      %v2155 = vsel %vm2135, %v2122, %v1891
      %v2157 = vsel %vm2135, %v2124, %v1893
      %v2159 = vsel %vm2135, %v2126, %v1895
      %v2161 = vsel %vm2135, %v2128, %v1897
      %v2163 = vsel %vm2135, %v2130, %v1899
      %v2165 = vsel %vm2135, %v2132, %v1901
      %v2167 = vsel %vm2135, %v2134, %v1903
      %v2168 = vld [vmem:[%s1] sm:$0xf]
      %v2169 = vld [vmem:[%s1 + $0x4] sm:$0xf]
      %v2170 = vld [vmem:[%s1 + $0x8] sm:$0xf]
      %v2171 = vld [vmem:[%s1 + $0xc] sm:$0xf]
      %v2172 = vld [vmem:[%s1 + $0x10] sm:$0x3]
      %v2173 = vld [vmem:[%s2] sm:$0x1]
      %v2175 = vlaneseq
      %v2176 = vshrl.u32 %v2175, 7
      %v2177 = vsub.s32 0, %v2176
      %v2178 = vrot.slane %v2173, %v2177
      %v2185 = vunpack.c.l.b16 %v2168
      %v2186 = vunpack.c.l.b16 %v2169
      %v2187 = vunpack.c.l.b16 %v2170
      %v2188 = vunpack.c.l.b16 %v2171
      %v2189 = vunpack.c.l.b16 %v2172
      %v2190 = vpack.c.b16 %v2186, %v2185
      %v2191 = vpack.c.b16 %v2188, %v2187
      %v2192 = vpack.c.b16 %v2189, %v2189
      %vm2195 = vcmask 293888
      %v2196 = vsel %vm2195, %v2137, 0
      %v2198 = vsel %vm2195, %v2139, 0
      %v2200 = vsel %vm2195, %v2141, 0
      %v2202 = vsel %vm2195, %v2143, 0
      %v2204 = vsel %vm2195, %v2145, 0
      %v2206 = vsel %vm2195, %v2147, 0
      %v2208 = vsel %vm2195, %v2149, 0
      %v2210 = vsel %vm2195, %v2151, 0
      %v2212 = vsel %vm2195, %v2153, 0
      %v2214 = vsel %vm2195, %v2155, 0
      %v2216 = vsel %vm2195, %v2157, 0
      %v2218 = vsel %vm2195, %v2159, 0
      %v2220 = vsel %vm2195, %v2161, 0
      %v2222 = vsel %vm2195, %v2163, 0
      %v2224 = vsel %vm2195, %v2165, 0
      %v2226 = vsel %vm2195, %v2167, 0
      %vm2228 = vcmask 1041408
      %v2230 = vsel %vm2228, %v2192, 0
      %2232 = vmatprep.subr.bf16.mxu0 0
      %2233 = vmatpush1.bf16.msra.mxu0 0
      %2234 = vmatprep.subr.bf16.mxu0 0
      %2235 = vmatpush1.bf16.msra.mxu0 0
      %2236 = vmatprep.subr.bf16.mxu0 0
      %2237 = vmatpush1.bf16.msra.mxu0 0
      %2238 = vmatprep.subr.bf16.mxu0 0
      %2239 = vmatpush1.bf16.msra.mxu0 0
      %2240 = vmatprep.subr.bf16.mxu0 0
      %2241 = vmatpush1.bf16.msra.mxu0 0
      %2242 = vmatprep.subr.bf16.mxu0 0
      %2243 = vmatpush1.bf16.msra.mxu0 %v2230
      %2244 = vmatprep.subr.bf16.mxu0 0
      %2245 = vmatpush1.bf16.msra.mxu0 %v2191
      %2246 = vmatprep.subr.bf16.mxu0 0
      %2247 = vmatpush1.bf16.msra.mxu0 %v2190
      %2248 = vmatprep.subr.bf16.mxu0 0
      %2249 = vmatpush2.bf16.msra.mxu0 0
      %2250 = vmatprep.subr.bf16.mxu0 0
      %2251 = vmatpush2.bf16.msra.mxu0 0
      %2252 = vmatprep.subr.bf16.mxu0 0
      %2253 = vmatpush2.bf16.msra.mxu0 0
      %2254 = vmatprep.subr.bf16.mxu0 0
      %2255 = vmatpush2.bf16.msra.mxu0 0
      %2256 = vmatprep.subr.bf16.mxu0 0
      %2257 = vmatpush2.bf16.msra.mxu0 0
      %2258 = vmatprep.subr.bf16.mxu0 0
      %2259 = vmatpush2.bf16.msra.mxu0 0
      %2260 = vmatprep.subr.bf16.mxu0 0
      %2261 = vmatpush2.bf16.msra.mxu0 0
      %2262 = vmatprep.subr.bf16.mxu0 0
      %2263 = vmatpush2.bf16.msra.mxu0 0
      %2264 = vmatprep.mubr.bf16.mxu0 0
      %2265 = vmatmul.mubr.bf16.gmra.mxu0 %v2196
      %v2266 = vpop.f32.mrf.mxu0
      %v2267 = vadd.f32 %v2178, %v2266
      %v2268 = vpop.f32.mrf.mxu0
      %v2269 = vpop.f32.mrf.mxu0
      %v2270 = vadd.f32 %v2178, %v2269
      %v2271 = vpop.f32.mrf.mxu0
      %2272 = vmatprep.mubr.bf16.mxu0 0
      %2273 = vmatmul.mubr.bf16.gmra.mxu0 %v2198
      %v2274 = vpop.f32.mrf.mxu0
      %v2275 = vadd.f32 %v2178, %v2274
      %v2276 = vpop.f32.mrf.mxu0
      %v2277 = vpop.f32.mrf.mxu0
      %v2278 = vadd.f32 %v2178, %v2277
      %v2279 = vpop.f32.mrf.mxu0
      %2280 = vmatprep.mubr.bf16.mxu0 0
      %2281 = vmatmul.mubr.bf16.gmra.mxu0 %v2200
      %v2282 = vpop.f32.mrf.mxu0
      %v2283 = vadd.f32 %v2178, %v2282
      %v2284 = vpop.f32.mrf.mxu0
      %v2285 = vpop.f32.mrf.mxu0
      %v2286 = vadd.f32 %v2178, %v2285
      %v2287 = vpop.f32.mrf.mxu0
      %2288 = vmatprep.mubr.bf16.mxu0 0
      %2289 = vmatmul.mubr.bf16.gmra.mxu0 %v2202
      %v2290 = vpop.f32.mrf.mxu0
      %v2291 = vadd.f32 %v2178, %v2290
      %v2292 = vpop.f32.mrf.mxu0
      %v2293 = vpop.f32.mrf.mxu0
      %v2294 = vadd.f32 %v2178, %v2293
      %v2295 = vpop.f32.mrf.mxu0
      %2296 = vmatprep.mubr.bf16.mxu0 0
      %2297 = vmatmul.mubr.bf16.gmra.mxu0 %v2204
      %v2298 = vpop.f32.mrf.mxu0
      %v2299 = vadd.f32 %v2178, %v2298
      %v2300 = vpop.f32.mrf.mxu0
      %v2301 = vpop.f32.mrf.mxu0
      %v2302 = vadd.f32 %v2178, %v2301
      %v2303 = vpop.f32.mrf.mxu0
      %2304 = vmatprep.mubr.bf16.mxu0 0
      %2305 = vmatmul.mubr.bf16.gmra.mxu0 %v2206
      %v2306 = vpop.f32.mrf.mxu0
      %v2307 = vadd.f32 %v2178, %v2306
      %v2308 = vpop.f32.mrf.mxu0
      %v2309 = vpop.f32.mrf.mxu0
      %v2310 = vadd.f32 %v2178, %v2309
      %v2311 = vpop.f32.mrf.mxu0
      %2312 = vmatprep.mubr.bf16.mxu0 0
      %2313 = vmatmul.mubr.bf16.gmra.mxu0 %v2208
      %v2314 = vpop.f32.mrf.mxu0
      %v2315 = vadd.f32 %v2178, %v2314
      %v2316 = vpop.f32.mrf.mxu0
      %v2317 = vpop.f32.mrf.mxu0
      %v2318 = vadd.f32 %v2178, %v2317
      %v2319 = vpop.f32.mrf.mxu0
      %2320 = vmatprep.mubr.bf16.mxu0 0
      %2321 = vmatmul.mubr.bf16.gmra.mxu0 %v2210
      %v2322 = vpop.f32.mrf.mxu0
      %v2323 = vadd.f32 %v2178, %v2322
      %v2324 = vpop.f32.mrf.mxu0
      %v2325 = vpop.f32.mrf.mxu0
      %v2326 = vadd.f32 %v2178, %v2325
      %v2327 = vpop.f32.mrf.mxu0
      %2328 = vmatprep.mubr.bf16.mxu0 0
      %2329 = vmatmul.mubr.bf16.gmra.mxu0 %v2212
      %v2330 = vpop.f32.mrf.mxu0
      %v2331 = vadd.f32 %v2178, %v2330
      %v2332 = vpop.f32.mrf.mxu0
      %v2333 = vpop.f32.mrf.mxu0
      %v2334 = vadd.f32 %v2178, %v2333
      %v2335 = vpop.f32.mrf.mxu0
      %2336 = vmatprep.mubr.bf16.mxu0 0
      %2337 = vmatmul.mubr.bf16.gmra.mxu0 %v2214
      %v2338 = vpop.f32.mrf.mxu0
      %v2339 = vadd.f32 %v2178, %v2338
      %v2340 = vpop.f32.mrf.mxu0
      %v2341 = vpop.f32.mrf.mxu0
      %v2342 = vadd.f32 %v2178, %v2341
      %v2343 = vpop.f32.mrf.mxu0
      %2344 = vmatprep.mubr.bf16.mxu0 0
      %2345 = vmatmul.mubr.bf16.gmra.mxu0 %v2216
      %v2346 = vpop.f32.mrf.mxu0
      %v2347 = vadd.f32 %v2178, %v2346
      %v2348 = vpop.f32.mrf.mxu0
      %v2349 = vpop.f32.mrf.mxu0
      %v2350 = vadd.f32 %v2178, %v2349
      %v2351 = vpop.f32.mrf.mxu0
      %2352 = vmatprep.mubr.bf16.mxu0 0
      %2353 = vmatmul.mubr.bf16.gmra.mxu0 %v2218
      %v2354 = vpop.f32.mrf.mxu0
      %v2355 = vadd.f32 %v2178, %v2354
      %v2356 = vpop.f32.mrf.mxu0
      %v2357 = vpop.f32.mrf.mxu0
      %v2358 = vadd.f32 %v2178, %v2357
      %v2359 = vpop.f32.mrf.mxu0
      %2360 = vmatprep.mubr.bf16.mxu0 0
      %2361 = vmatmul.mubr.bf16.gmra.mxu0 %v2220
      %v2362 = vpop.f32.mrf.mxu0
      %v2363 = vadd.f32 %v2178, %v2362
      %v2364 = vpop.f32.mrf.mxu0
      %v2365 = vpop.f32.mrf.mxu0
      %v2366 = vadd.f32 %v2178, %v2365
      %v2367 = vpop.f32.mrf.mxu0
      %2368 = vmatprep.mubr.bf16.mxu0 0
      %2369 = vmatmul.mubr.bf16.gmra.mxu0 %v2222
      %v2370 = vpop.f32.mrf.mxu0
      %v2371 = vadd.f32 %v2178, %v2370
      %v2372 = vpop.f32.mrf.mxu0
      %v2373 = vpop.f32.mrf.mxu0
      %v2374 = vadd.f32 %v2178, %v2373
      %v2375 = vpop.f32.mrf.mxu0
      %2376 = vmatprep.mubr.bf16.mxu0 0
      %2377 = vmatmul.mubr.bf16.gmra.mxu0 %v2224
      %v2378 = vpop.f32.mrf.mxu0
      %v2379 = vadd.f32 %v2178, %v2378
      %v2380 = vpop.f32.mrf.mxu0
      %v2381 = vpop.f32.mrf.mxu0
      %v2382 = vadd.f32 %v2178, %v2381
      %v2383 = vpop.f32.mrf.mxu0
      %2384 = vmatprep.mubr.bf16.mxu0 0
      %2385 = vmatmul.mubr.bf16.gmra.mxu0 %v2226
      %v2386 = vpop.f32.mrf.mxu0
      %v2387 = vadd.f32 %v2178, %v2386
      %v2388 = vpop.f32.mrf.mxu0
      %v2389 = vpop.f32.mrf.mxu0
      %v2390 = vadd.f32 %v2178, %v2389
      %v2391 = vpop.f32.mrf.mxu0
      %2392 = vdwg.mxu0
      %vm2393 = vcmp.ge.f32.partialorder %v2267, 0.0
      %vm2394 = vcmp.ge.f32.partialorder %v2270, 0.0
      %vm2395 = vcmp.ge.f32.partialorder %v2275, 0.0
      %vm2396 = vcmp.ge.f32.partialorder %v2278, 0.0
      %vm2397 = vcmp.ge.f32.partialorder %v2283, 0.0
      %vm2398 = vcmp.ge.f32.partialorder %v2286, 0.0
      %vm2399 = vcmp.ge.f32.partialorder %v2291, 0.0
      %vm2400 = vcmp.ge.f32.partialorder %v2294, 0.0
      %vm2401 = vcmp.ge.f32.partialorder %v2299, 0.0
      %vm2402 = vcmp.ge.f32.partialorder %v2302, 0.0
      %vm2403 = vcmp.ge.f32.partialorder %v2307, 0.0
      %vm2404 = vcmp.ge.f32.partialorder %v2310, 0.0
      %vm2405 = vcmp.ge.f32.partialorder %v2315, 0.0
      %vm2406 = vcmp.ge.f32.partialorder %v2318, 0.0
      %vm2407 = vcmp.ge.f32.partialorder %v2323, 0.0
      %vm2408 = vcmp.ge.f32.partialorder %v2326, 0.0
      %vm2409 = vcmp.ge.f32.partialorder %v2331, 0.0
      %vm2410 = vcmp.ge.f32.partialorder %v2334, 0.0
      %vm2411 = vcmp.ge.f32.partialorder %v2339, 0.0
      %vm2412 = vcmp.ge.f32.partialorder %v2342, 0.0
      %vm2413 = vcmp.ge.f32.partialorder %v2347, 0.0
      %vm2414 = vcmp.ge.f32.partialorder %v2350, 0.0
      %vm2415 = vcmp.ge.f32.partialorder %v2355, 0.0
      %vm2416 = vcmp.ge.f32.partialorder %v2358, 0.0
      %vm2417 = vcmp.ge.f32.partialorder %v2363, 0.0
      %vm2418 = vcmp.ge.f32.partialorder %v2366, 0.0
      %vm2419 = vcmp.ge.f32.partialorder %v2371, 0.0
      %vm2420 = vcmp.ge.f32.partialorder %v2374, 0.0
      %vm2421 = vcmp.ge.f32.partialorder %v2379, 0.0
      %vm2422 = vcmp.ge.f32.partialorder %v2382, 0.0
      %vm2423 = vcmp.ge.f32.partialorder %v2387, 0.0
      %vm2424 = vcmp.ge.f32.partialorder %v2390, 0.0
      %v2425 = vmul.f32 %v2267, 0.2
      %v2426 = vmul.f32 %v2270, 0.2
      %v2427 = vmul.f32 %v2275, 0.2
      %v2428 = vmul.f32 %v2278, 0.2
      %v2429 = vmul.f32 %v2283, 0.2
      %v2430 = vmul.f32 %v2286, 0.2
      %v2431 = vmul.f32 %v2291, 0.2
      %v2432 = vmul.f32 %v2294, 0.2
      %v2433 = vmul.f32 %v2299, 0.2
      %v2434 = vmul.f32 %v2302, 0.2
      %v2435 = vmul.f32 %v2307, 0.2
      %v2436 = vmul.f32 %v2310, 0.2
      %v2437 = vmul.f32 %v2315, 0.2
      %v2438 = vmul.f32 %v2318, 0.2
      %v2439 = vmul.f32 %v2323, 0.2
      %v2440 = vmul.f32 %v2326, 0.2
      %v2441 = vmul.f32 %v2331, 0.2
      %v2442 = vmul.f32 %v2334, 0.2
      %v2443 = vmul.f32 %v2339, 0.2
      %v2444 = vmul.f32 %v2342, 0.2
      %v2445 = vmul.f32 %v2347, 0.2
      %v2446 = vmul.f32 %v2350, 0.2
      %v2447 = vmul.f32 %v2355, 0.2
      %v2448 = vmul.f32 %v2358, 0.2
      %v2449 = vmul.f32 %v2363, 0.2
      %v2450 = vmul.f32 %v2366, 0.2
      %v2451 = vmul.f32 %v2371, 0.2
      %v2452 = vmul.f32 %v2374, 0.2
      %v2453 = vmul.f32 %v2379, 0.2
      %v2454 = vmul.f32 %v2382, 0.2
      %v2455 = vmul.f32 %v2387, 0.2
      %v2456 = vmul.f32 %v2390, 0.2
      %v2457 = vsel %vm2393, %v2267, %v2425
      %v2458 = vsel %vm2394, %v2270, %v2426
      %v2459 = vsel %vm2395, %v2275, %v2427
      %v2460 = vsel %vm2396, %v2278, %v2428
      %v2461 = vsel %vm2397, %v2283, %v2429
      %v2462 = vsel %vm2398, %v2286, %v2430
      %v2463 = vsel %vm2399, %v2291, %v2431
      %v2464 = vsel %vm2400, %v2294, %v2432
      %v2465 = vsel %vm2401, %v2299, %v2433
      %v2466 = vsel %vm2402, %v2302, %v2434
      %v2467 = vsel %vm2403, %v2307, %v2435
      %v2468 = vsel %vm2404, %v2310, %v2436
      %v2469 = vsel %vm2405, %v2315, %v2437
      %v2470 = vsel %vm2406, %v2318, %v2438
      %v2471 = vsel %vm2407, %v2323, %v2439
      %v2472 = vsel %vm2408, %v2326, %v2440
      %v2473 = vsel %vm2409, %v2331, %v2441
      %v2474 = vsel %vm2410, %v2334, %v2442
      %v2475 = vsel %vm2411, %v2339, %v2443
      %v2476 = vsel %vm2412, %v2342, %v2444
      %v2477 = vsel %vm2413, %v2347, %v2445
      %v2478 = vsel %vm2414, %v2350, %v2446
      %v2479 = vsel %vm2415, %v2355, %v2447
      %v2480 = vsel %vm2416, %v2358, %v2448
      %v2481 = vsel %vm2417, %v2363, %v2449
      %v2482 = vsel %vm2418, %v2366, %v2450
      %v2483 = vsel %vm2419, %v2371, %v2451
      %v2484 = vsel %vm2420, %v2374, %v2452
      %v2485 = vsel %vm2421, %v2379, %v2453
      %v2486 = vsel %vm2422, %v2382, %v2454
      %v2487 = vsel %vm2423, %v2387, %v2455
      %v2488 = vsel %vm2424, %v2390, %v2456
      %v2489 = vsub.f32 0.0, %v2267
      %v2490 = vsub.f32 0.0, %v2270
      %v2491 = vsub.f32 0.0, %v2275
      %v2492 = vsub.f32 0.0, %v2278
      %v2493 = vsub.f32 0.0, %v2283
      %v2494 = vsub.f32 0.0, %v2286
      %v2495 = vsub.f32 0.0, %v2291
      %v2496 = vsub.f32 0.0, %v2294
      %v2497 = vsub.f32 0.0, %v2299
      %v2498 = vsub.f32 0.0, %v2302
      %v2499 = vsub.f32 0.0, %v2307
      %v2500 = vsub.f32 0.0, %v2310
      %v2501 = vsub.f32 0.0, %v2315
      %v2502 = vsub.f32 0.0, %v2318
      %v2503 = vsub.f32 0.0, %v2323
      %v2504 = vsub.f32 0.0, %v2326
      %v2505 = vsub.f32 0.0, %v2331
      %v2506 = vsub.f32 0.0, %v2334
      %v2507 = vsub.f32 0.0, %v2339
      %v2508 = vsub.f32 0.0, %v2342
      %v2509 = vsub.f32 0.0, %v2347
      %v2510 = vsub.f32 0.0, %v2350
      %v2511 = vsub.f32 0.0, %v2355
      %v2512 = vsub.f32 0.0, %v2358
      %v2513 = vsub.f32 0.0, %v2363
      %v2514 = vsub.f32 0.0, %v2366
      %v2515 = vsub.f32 0.0, %v2371
      %v2516 = vsub.f32 0.0, %v2374
      %v2517 = vsub.f32 0.0, %v2379
      %v2518 = vsub.f32 0.0, %v2382
      %v2519 = vsub.f32 0.0, %v2387
      %v2520 = vsub.f32 0.0, %v2390
      %v2521 = vmul.f32 %v2489, 1.442695
      %v2522 = vpow.pop %v2521
      %v2523 = vmul.f32 %v2490, 1.442695
      %v2524 = vpow.pop %v2523
      %v2525 = vmul.f32 %v2491, 1.442695
      %v2526 = vpow.pop %v2525
      %v2527 = vmul.f32 %v2492, 1.442695
      %v2528 = vpow.pop %v2527
      %v2529 = vmul.f32 %v2493, 1.442695
      %v2530 = vpow.pop %v2529
      %v2531 = vmul.f32 %v2494, 1.442695
      %v2532 = vpow.pop %v2531
      %v2533 = vmul.f32 %v2495, 1.442695
      %v2534 = vpow.pop %v2533
      %v2535 = vmul.f32 %v2496, 1.442695
      %v2536 = vpow.pop %v2535
      %v2537 = vmul.f32 %v2497, 1.442695
      %v2538 = vpow.pop %v2537
      %v2539 = vmul.f32 %v2498, 1.442695
      %v2540 = vpow.pop %v2539
      %v2541 = vmul.f32 %v2499, 1.442695
      %v2542 = vpow.pop %v2541
      %v2543 = vmul.f32 %v2500, 1.442695
      %v2544 = vpow.pop %v2543
      %v2545 = vmul.f32 %v2501, 1.442695
      %v2546 = vpow.pop %v2545
      %v2547 = vmul.f32 %v2502, 1.442695
      %v2548 = vpow.pop %v2547
      %v2549 = vmul.f32 %v2503, 1.442695
      %v2550 = vpow.pop %v2549
      %v2551 = vmul.f32 %v2504, 1.442695
      %v2552 = vpow.pop %v2551
      %v2553 = vmul.f32 %v2505, 1.442695
      %v2554 = vpow.pop %v2553
      %v2555 = vmul.f32 %v2506, 1.442695
      %v2556 = vpow.pop %v2555
      %v2557 = vmul.f32 %v2507, 1.442695
      %v2558 = vpow.pop %v2557
      %v2559 = vmul.f32 %v2508, 1.442695
      %v2560 = vpow.pop %v2559
      %v2561 = vmul.f32 %v2509, 1.442695
      %v2562 = vpow.pop %v2561
      %v2563 = vmul.f32 %v2510, 1.442695
      %v2564 = vpow.pop %v2563
      %v2565 = vmul.f32 %v2511, 1.442695
      %v2566 = vpow.pop %v2565
      %v2567 = vmul.f32 %v2512, 1.442695
      %v2568 = vpow.pop %v2567
      %v2569 = vmul.f32 %v2513, 1.442695
      %v2570 = vpow.pop %v2569
      %v2571 = vmul.f32 %v2514, 1.442695
      %v2572 = vpow.pop %v2571
      %v2573 = vmul.f32 %v2515, 1.442695
      %v2574 = vpow.pop %v2573
      %v2575 = vmul.f32 %v2516, 1.442695
      %v2576 = vpow.pop %v2575
      %v2577 = vmul.f32 %v2517, 1.442695
      %v2578 = vpow.pop %v2577
      %v2579 = vmul.f32 %v2518, 1.442695
      %v2580 = vpow.pop %v2579
      %v2581 = vmul.f32 %v2519, 1.442695
      %v2582 = vpow.pop %v2581
      %v2583 = vmul.f32 %v2520, 1.442695
      %v2584 = vpow.pop %v2583
      %v2585 = vadd.f32 %v2522, 1.0
      %v2586 = vadd.f32 %v2524, 1.0
      %v2587 = vadd.f32 %v2526, 1.0
      %v2588 = vadd.f32 %v2528, 1.0
      %v2589 = vadd.f32 %v2530, 1.0
      %v2590 = vadd.f32 %v2532, 1.0
      %v2591 = vadd.f32 %v2534, 1.0
      %v2592 = vadd.f32 %v2536, 1.0
      %v2593 = vadd.f32 %v2538, 1.0
      %v2594 = vadd.f32 %v2540, 1.0
      %v2595 = vadd.f32 %v2542, 1.0
      %v2596 = vadd.f32 %v2544, 1.0
      %v2597 = vadd.f32 %v2546, 1.0
      %v2598 = vadd.f32 %v2548, 1.0
      %v2599 = vadd.f32 %v2550, 1.0
      %v2600 = vadd.f32 %v2552, 1.0
      %v2601 = vadd.f32 %v2554, 1.0
      %v2602 = vadd.f32 %v2556, 1.0
      %v2603 = vadd.f32 %v2558, 1.0
      %v2604 = vadd.f32 %v2560, 1.0
      %v2605 = vadd.f32 %v2562, 1.0
      %v2606 = vadd.f32 %v2564, 1.0
      %v2607 = vadd.f32 %v2566, 1.0
      %v2608 = vadd.f32 %v2568, 1.0
      %v2609 = vadd.f32 %v2570, 1.0
      %v2610 = vadd.f32 %v2572, 1.0
      %v2611 = vadd.f32 %v2574, 1.0
      %v2612 = vadd.f32 %v2576, 1.0
      %v2613 = vadd.f32 %v2578, 1.0
      %v2614 = vadd.f32 %v2580, 1.0
      %v2615 = vadd.f32 %v2582, 1.0
      %v2616 = vadd.f32 %v2584, 1.0
      %v2617 = vrcp.pop %v2585
      %v2618 = vmul.f32 1.0, %v2617
      %v2619 = vrcp.pop %v2586
      %v2620 = vmul.f32 1.0, %v2619
      %v2621 = vrcp.pop %v2587
      %v2622 = vmul.f32 1.0, %v2621
      %v2623 = vrcp.pop %v2588
      %v2624 = vmul.f32 1.0, %v2623
      %v2625 = vrcp.pop %v2589
      %v2626 = vmul.f32 1.0, %v2625
      %v2627 = vrcp.pop %v2590
      %v2628 = vmul.f32 1.0, %v2627
      %v2629 = vrcp.pop %v2591
      %v2630 = vmul.f32 1.0, %v2629
      %v2631 = vrcp.pop %v2592
      %v2632 = vmul.f32 1.0, %v2631
      %v2633 = vrcp.pop %v2593
      %v2634 = vmul.f32 1.0, %v2633
      %v2635 = vrcp.pop %v2594
      %v2636 = vmul.f32 1.0, %v2635
      %v2637 = vrcp.pop %v2595
      %v2638 = vmul.f32 1.0, %v2637
      %v2639 = vrcp.pop %v2596
      %v2640 = vmul.f32 1.0, %v2639
      %v2641 = vrcp.pop %v2597
      %v2642 = vmul.f32 1.0, %v2641
      %v2643 = vrcp.pop %v2598
      %v2644 = vmul.f32 1.0, %v2643
      %v2645 = vrcp.pop %v2599
      %v2646 = vmul.f32 1.0, %v2645
      %v2647 = vrcp.pop %v2600
      %v2648 = vmul.f32 1.0, %v2647
      %v2649 = vrcp.pop %v2601
      %v2650 = vmul.f32 1.0, %v2649
      %v2651 = vrcp.pop %v2602
      %v2652 = vmul.f32 1.0, %v2651
      %v2653 = vrcp.pop %v2603
      %v2654 = vmul.f32 1.0, %v2653
      %v2655 = vrcp.pop %v2604
      %v2656 = vmul.f32 1.0, %v2655
      %v2657 = vrcp.pop %v2605
      %v2658 = vmul.f32 1.0, %v2657
      %v2659 = vrcp.pop %v2606
      %v2660 = vmul.f32 1.0, %v2659
      %v2661 = vrcp.pop %v2607
      %v2662 = vmul.f32 1.0, %v2661
      %v2663 = vrcp.pop %v2608
      %v2664 = vmul.f32 1.0, %v2663
      %v2665 = vrcp.pop %v2609
      %v2666 = vmul.f32 1.0, %v2665
      %v2667 = vrcp.pop %v2610
      %v2668 = vmul.f32 1.0, %v2667
      %v2669 = vrcp.pop %v2611
      %v2670 = vmul.f32 1.0, %v2669
      %v2671 = vrcp.pop %v2612
      %v2672 = vmul.f32 1.0, %v2671
      %v2673 = vrcp.pop %v2613
      %v2674 = vmul.f32 1.0, %v2673
      %v2675 = vrcp.pop %v2614
      %v2676 = vmul.f32 1.0, %v2675
      %v2677 = vrcp.pop %v2615
      %v2678 = vmul.f32 1.0, %v2677
      %v2679 = vrcp.pop %v2616
      %v2680 = vmul.f32 1.0, %v2679
      %2713 = vrot.lane.b32.xlu0 %v2618, 124
      %v2714 = vpop.permute.xlu0 %2713
      %2715 = vrot.lane.b32.xlu0 %v2620, 124
      %v2716 = vpop.permute.xlu0 %2715
      %2717 = vrot.lane.b32.xlu0 %v2622, 124
      %v2718 = vpop.permute.xlu0 %2717
      %2719 = vrot.lane.b32.xlu0 %v2624, 124
      %v2720 = vpop.permute.xlu0 %2719
      %2721 = vrot.lane.b32.xlu0 %v2626, 124
      %v2722 = vpop.permute.xlu0 %2721
      %2723 = vrot.lane.b32.xlu0 %v2628, 124
      %v2724 = vpop.permute.xlu0 %2723
      %2725 = vrot.lane.b32.xlu0 %v2630, 124
      %v2726 = vpop.permute.xlu0 %2725
      %2727 = vrot.lane.b32.xlu0 %v2632, 124
      %v2728 = vpop.permute.xlu0 %2727
      %2729 = vrot.lane.b32.xlu0 %v2634, 124
      %v2730 = vpop.permute.xlu0 %2729
      %2731 = vrot.lane.b32.xlu0 %v2636, 124
      %v2732 = vpop.permute.xlu0 %2731
      %2733 = vrot.lane.b32.xlu0 %v2638, 124
      %v2734 = vpop.permute.xlu0 %2733
      %2735 = vrot.lane.b32.xlu0 %v2640, 124
      %v2736 = vpop.permute.xlu0 %2735
      %2737 = vrot.lane.b32.xlu0 %v2642, 124
      %v2738 = vpop.permute.xlu0 %2737
      %2739 = vrot.lane.b32.xlu0 %v2644, 124
      %v2740 = vpop.permute.xlu0 %2739
      %2741 = vrot.lane.b32.xlu0 %v2646, 124
      %v2742 = vpop.permute.xlu0 %2741
      %2743 = vrot.lane.b32.xlu0 %v2648, 124
      %v2744 = vpop.permute.xlu0 %2743
      %2745 = vrot.lane.b32.xlu0 %v2650, 124
      %v2746 = vpop.permute.xlu0 %2745
      %2747 = vrot.lane.b32.xlu0 %v2652, 124
      %v2748 = vpop.permute.xlu0 %2747
      %2749 = vrot.lane.b32.xlu0 %v2654, 124
      %v2750 = vpop.permute.xlu0 %2749
      %2751 = vrot.lane.b32.xlu0 %v2656, 124
      %v2752 = vpop.permute.xlu0 %2751
      %2753 = vrot.lane.b32.xlu0 %v2658, 124
      %v2754 = vpop.permute.xlu0 %2753
      %2755 = vrot.lane.b32.xlu0 %v2660, 124
      %v2756 = vpop.permute.xlu0 %2755
      %2757 = vrot.lane.b32.xlu0 %v2662, 124
      %v2758 = vpop.permute.xlu0 %2757
      %2759 = vrot.lane.b32.xlu0 %v2664, 124
      %v2760 = vpop.permute.xlu0 %2759
      %2761 = vrot.lane.b32.xlu0 %v2666, 124
      %v2762 = vpop.permute.xlu0 %2761
      %2763 = vrot.lane.b32.xlu0 %v2668, 124
      %v2764 = vpop.permute.xlu0 %2763
      %2765 = vrot.lane.b32.xlu0 %v2670, 124
      %v2766 = vpop.permute.xlu0 %2765
      %2767 = vrot.lane.b32.xlu0 %v2672, 124
      %v2768 = vpop.permute.xlu0 %2767
      %2769 = vrot.lane.b32.xlu0 %v2674, 124
      %v2770 = vpop.permute.xlu0 %2769
      %2771 = vrot.lane.b32.xlu0 %v2676, 124
      %v2772 = vpop.permute.xlu0 %2771
      %2773 = vrot.lane.b32.xlu0 %v2678, 124
      %v2774 = vpop.permute.xlu0 %2773
      %2775 = vrot.lane.b32.xlu0 %v2680, 124
      %v2776 = vpop.permute.xlu0 %2775
      %v2809 = vmul.f32 %v2457, %v2714
      %v2810 = vmul.f32 %v2458, %v2716
      %v2811 = vmul.f32 %v2459, %v2718
      %v2812 = vmul.f32 %v2460, %v2720
      %v2813 = vmul.f32 %v2461, %v2722
      %v2814 = vmul.f32 %v2462, %v2724
      %v2815 = vmul.f32 %v2463, %v2726
      %v2816 = vmul.f32 %v2464, %v2728
      %v2817 = vmul.f32 %v2465, %v2730
      %v2818 = vmul.f32 %v2466, %v2732
      %v2819 = vmul.f32 %v2467, %v2734
      %v2820 = vmul.f32 %v2468, %v2736
      %v2821 = vmul.f32 %v2469, %v2738
      %v2822 = vmul.f32 %v2470, %v2740
      %v2823 = vmul.f32 %v2471, %v2742
      %v2824 = vmul.f32 %v2472, %v2744
      %v2825 = vmul.f32 %v2473, %v2746
      %v2826 = vmul.f32 %v2474, %v2748
      %v2827 = vmul.f32 %v2475, %v2750
      %v2828 = vmul.f32 %v2476, %v2752
      %v2829 = vmul.f32 %v2477, %v2754
      %v2830 = vmul.f32 %v2478, %v2756
      %v2831 = vmul.f32 %v2479, %v2758
      %v2832 = vmul.f32 %v2480, %v2760
      %v2833 = vmul.f32 %v2481, %v2762
      %v2834 = vmul.f32 %v2482, %v2764
      %v2835 = vmul.f32 %v2483, %v2766
      %v2836 = vmul.f32 %v2484, %v2768
      %v2837 = vmul.f32 %v2485, %v2770
      %v2838 = vmul.f32 %v2486, %v2772
      %v2839 = vmul.f32 %v2487, %v2774
      %v2840 = vmul.f32 %v2488, %v2776
      %2841 = vst.msk [vmem:[%s192] sm:$0xff] %vm1904, %v2809
      %2842 = vst.msk [vmem:[%s192 + $0x8] sm:$0xff] %vm1904, %v2810
      %2843 = vst.msk [vmem:[%s192 + $0x10] sm:$0xff] %vm1904, %v2811
      %2844 = vst.msk [vmem:[%s192 + $0x18] sm:$0xff] %vm1904, %v2812
      %2845 = vst.msk [vmem:[%s192 + $0x20] sm:$0xff] %vm1904, %v2813
      %2846 = vst.msk [vmem:[%s192 + $0x28] sm:$0xff] %vm1904, %v2814
      %2847 = vst.msk [vmem:[%s192 + $0x30] sm:$0xff] %vm1904, %v2815
      %2848 = vst.msk [vmem:[%s192 + $0x38] sm:$0xff] %vm1904, %v2816
      %2849 = vst.msk [vmem:[%s192 + $0x40] sm:$0xff] %vm1904, %v2817
      %2850 = vst.msk [vmem:[%s192 + $0x48] sm:$0xff] %vm1904, %v2818
      %2851 = vst.msk [vmem:[%s192 + $0x50] sm:$0xff] %vm1904, %v2819
      %2852 = vst.msk [vmem:[%s192 + $0x58] sm:$0xff] %vm1904, %v2820
      %2853 = vst.msk [vmem:[%s192 + $0x60] sm:$0xff] %vm1904, %v2821
      %2854 = vst.msk [vmem:[%s192 + $0x68] sm:$0xff] %vm1904, %v2822
      %2855 = vst.msk [vmem:[%s192 + $0x70] sm:$0xff] %vm1904, %v2823
      %2856 = vst.msk [vmem:[%s192 + $0x78] sm:$0xff] %vm1904, %v2824
      %2857 = vst.msk [vmem:[%s192 + $0x80] sm:$0xff] %vm1904, %v2825
      %2858 = vst.msk [vmem:[%s192 + $0x88] sm:$0xff] %vm1904, %v2826
      %2859 = vst.msk [vmem:[%s192 + $0x90] sm:$0xff] %vm1904, %v2827
      %2860 = vst.msk [vmem:[%s192 + $0x98] sm:$0xff] %vm1904, %v2828
      %2861 = vst.msk [vmem:[%s192 + $0xa0] sm:$0xff] %vm1904, %v2829
      %2862 = vst.msk [vmem:[%s192 + $0xa8] sm:$0xff] %vm1904, %v2830
      %2863 = vst.msk [vmem:[%s192 + $0xb0] sm:$0xff] %vm1904, %v2831
      %2864 = vst.msk [vmem:[%s192 + $0xb8] sm:$0xff] %vm1904, %v2832
      %2865 = vst.msk [vmem:[%s192 + $0xc0] sm:$0xff] %vm1904, %v2833
      %2866 = vst.msk [vmem:[%s192 + $0xc8] sm:$0xff] %vm1904, %v2834
      %2867 = vst.msk [vmem:[%s192 + $0xd0] sm:$0xff] %vm1904, %v2835
      %2868 = vst.msk [vmem:[%s192 + $0xd8] sm:$0xff] %vm1904, %v2836
      %2869 = vst.msk [vmem:[%s192 + $0xe0] sm:$0xff] %vm1904, %v2837
      %2870 = vst.msk [vmem:[%s192 + $0xe8] sm:$0xff] %vm1904, %v2838
      %2871 = vst.msk [vmem:[%s192 + $0xf0] sm:$0xff] %vm1904, %v2839
      %2872 = vst.msk [vmem:[%s192 + $0xf8] sm:$0xff] %vm1904, %v2840
      %p2873 = scmp.lt.s32.totalorder %s18, 1
      %s2874 = scalar_select %p2873, %s18, 1
      %p2875 = scmp.lt.s32.totalorder %s19, 0
      %s2876 = scalar_select %p2875, %s19, 0
      %s2877 = smul.addr %s2876, 32
      %s2878 = smul.addr %s2874, 32
      %s2879 = sadd.s32 %s2877, %s2878
      %s2880 = smul.addr %s2879, 8
      %s2881 = scalar_lea.vmem %s3, %s2880
      // Predicated region
      $region33: #{_gate_conv_forward.1} parent=31 // pred_check
        %p2882 = pneg %p114
      $region34: #{_gate_conv_forward.1} parent=31 // pred_check_branch
        %2884 = sbr.rel (%p2882) target = $region36
      $region35: #{_gate_conv_forward.1} parent=31 // pred_region
        _
      $region36: #{_gate_conv_forward.1} parent=31 // pred_fallthru
        _
    $region32: #{_gate_conv_forward.1} parent=5 // pred_fallthru
      _
    %p2885 = scmp.le.s32.totalorder 2, %s9
    // Predicated region
    $region37: #{_gate_conv_forward.1} parent=5 // pred_check
      %p2886 = pneg %p2885
    $region38: #{_gate_conv_forward.1} parent=5 // pred_check_branch
      %2888 = sbr.rel (%p2886) target = $region40
    $region39: #{_gate_conv_forward.1} parent=5 // pred_region
      %s2889 = ssub.s32 %s9, 2
      // Predicated region
      $region41: #{_gate_conv_forward.1} parent=39 // pred_check
        %p2890 = pneg %p120
      $region42: #{_gate_conv_forward.1} parent=39 // pred_check_branch
        %2892 = sbr.rel (%p2890) target = $region44
      $region43: #{_gate_conv_forward.1} parent=39 // pred_region
        %p2893 = scmp.lt.s32.totalorder %s20, 1
        %s2894 = scalar_select %p2893, %s20, 1
        %p2895 = scmp.lt.s32.totalorder %s21, 0
        %s2896 = scalar_select %p2895, %s21, 0
        %s2897 = smul.addr %s2896, 32
        %s2898 = smul.addr %s2894, 32
        %s2899 = sadd.s32 %s2897, %s2898
        %s2900 = smul.addr %s2899, 8
        %s2901 = scalar_lea.vmem %s3, %s2900
      $region44: #{_gate_conv_forward.1} parent=39 // pred_fallthru
        _
    $region40: #{_gate_conv_forward.1} parent=5 // pred_fallthru
      _
  $region6: #{_gate_conv_forward.1} parent=0 // loop_footer
    %s13 = sadd.s32 1, %s9
  $region7: #{_gate_conv_forward.1} parent=0 // loop_footer_branch
    %8 = sbr.rel target = $region3
  $region8: #{_gate_conv_forward.1} parent=0 // loop_exit
    _

</llo_original>
